<compile_context>
chip_gen: v5e
topology: v5e:2x2
jax: 0.10.0
libtpu: 0.0.40
codegen_flags: <defaults>
</compile_context>

<pallas_src>
import jax
import jax.numpy as jnp
from jax.experimental import pallas as pl
from jax.experimental.pallas import tpu as pltpu

# Set to jnp.bfloat16 on v6e/v7x once L is large enough to be MXU-bound
# (accumulation stays f32 via preferred_element_type). f32 keeps exact parity
# with the PyTorch reference at small sizes.
MATMUL_DTYPE = jnp.float32

CIN_PAD = 8  # first layer's 2 input channels padded up to the f32 sublane quantum

# (Cin, Cout, K) of every Conv1d in the nn.Sequential (layer-0 Cin already padded).
_LAYER_CFG = [
    (CIN_PAD, 16, 3),
    (16, 32, 5),
    (32, 64, 5),
    (64, 64, 5),
    (64, 64, 5),
    (64, 1, 3),
]

# Original (unpadded) PyTorch layer shapes, for parameter construction.
_TORCH_LAYER_CFG = [
    (2, 16, 3),
    (16, 32, 5),
    (32, 64, 5),
    (64, 64, 5),
    (64, 64, 5),
    (64, 1, 3),
]


def _reflect_pad_lanes(x, p):
    """PyTorch-style 'reflect' pad (edge NOT repeated) along the lane (last) axis."""
    if p == 0:
        return x
    L = x.shape[-1]
    left = [x[:, j:j + 1] for j in range(p, 0, -1)]           # x[p], ..., x[1]
    right = [x[:, L - 1 - j:L - j] for j in range(1, p + 1)]  # x[L-2], ..., x[L-1-p]
    return jnp.concatenate(left + [x] + right, axis=-1)


def fused_conv_net_kernel(x_ref, *refs):
    """All 6 conv+ReLU layers for one batch element, fully in VMEM.

    x_ref : (1, CIN_PAD, L)  input slab (channels 2..7 are zero padding)
    refs  : w1, b1, ..., w6, b6, o_ref
            w_i : (Cout, K*Cin) im2col weight; last layer: (K*Cin, 1) column vector
            b_i : (Cout, 1)
    o_ref : (1, 1, L)
    """
    o_ref = refs[-1]
    wb = refs[:-1]
    n_layers = len(wb) // 2

    x = x_ref[0]                                   # (Cin, L) f32
    for li in range(n_layers):                     # static unroll over 6 layers
        w = wb[2 * li][...]
        b = wb[2 * li + 1][...]
        cin, L = x.shape
        cout = b.shape[0]
        K = (w.shape[0] if cout == 1 else w.shape[1]) // cin
        p = (K - 1) // 2

        xp = _reflect_pad_lanes(x, p)              # (Cin, L + 2p)
        # im2col stack: rows ordered tap-major then channel (row = k*Cin + ci).
        cols = jnp.concatenate([xp[:, k:k + L] for k in range(K)], axis=0)

        if cout == 1:
            # Final 64->1 layer: VPU multiply + sublane reduce; skips a 1-row
            # MXU matmul whose result drain would be ~99% idle.
            acc = jnp.sum(w * cols, axis=0, keepdims=True)           # (1, L)
        else:
            acc = jnp.dot(w.astype(MATMUL_DTYPE), cols.astype(MATMUL_DTYPE),
                          preferred_element_type=jnp.float32)        # (Cout, L)

        x = jnp.maximum(acc + b, 0.0)              # bias (Cout,1) broadcasts over L

    o_ref[0] = x.astype(o_ref.dtype)


def _prep_weights(params):
    """PyTorch-shaped (w: (Cout,Cin,K), b: (Cout,)) -> kernel-layout 2-D arrays."""
    flat = []
    for li, (w, b) in enumerate(params):
        cout, cin, k = w.shape
        if li == 0 and cin < CIN_PAD:
            w = jnp.pad(w, ((0, 0), (0, CIN_PAD - cin), (0, 0)))     # zero channels
            cin = CIN_PAD
        # Match the kernel's col ordering: column index = k*Cin + ci.
        w2d = jnp.transpose(w, (0, 2, 1)).reshape(cout, k * cin)
        if cout == 1:
            w2d = w2d.reshape(k * cin, 1)          # column vector for the VPU path
        flat.append(w2d.astype(jnp.float32))
        flat.append(b.reshape(cout, 1).astype(jnp.float32))
    return flat


@jax.jit
def neural_network_forward(a_vehicle, v_wheel, params):
    """Equivalent of NeuralNetwork.forward: (B, L), (B, L) -> (B, 1, L)."""
    B, L = a_vehicle.shape
    # torch.cat((unsqueeze(a,1), unsqueeze(v,1)), dim=1), zero-padded to 8 channels
    # (padded channels also have zero weights, so values are unchanged).
    x = jnp.concatenate(
        [a_vehicle[:, None, :].astype(jnp.float32),
         v_wheel[:, None, :].astype(jnp.float32),
         jnp.zeros((B, CIN_PAD - 2, L), jnp.float32)], axis=1)        # (B, 8, L)

    flat_wb = _prep_weights(params)

    in_specs = [pl.BlockSpec((1, CIN_PAD, L), lambda i: (i, 0, 0))]
    for arr in flat_wb:
        # Constant block index => weights/biases stay VMEM-resident across the grid.
        in_specs.append(pl.BlockSpec(arr.shape, lambda i: (0, 0)))

    flops = 2 * B * L * sum(cin * cout * k for cin, cout, k in _LAYER_CFG)
    bytes_accessed = 4 * (x.size + B * L + sum(int(a.size) for a in flat_wb))

    return pl.pallas_call(
        fused_conv_net_kernel,
        out_shape=jax.ShapeDtypeStruct((B, 1, L), jnp.float32),
        grid=(B,),
        in_specs=in_specs,
        out_specs=pl.BlockSpec((1, 1, L), lambda i: (i, 0, 0)),
        # Batch axis is embarrassingly parallel -> v7x's two TensorCores split it.
        compiler_params=pltpu.CompilerParams(dimension_semantics=("parallel",)),
        cost_estimate=pl.CostEstimate(flops=flops, transcendentals=0,
                                      bytes_accessed=bytes_accessed),
    )(x, *flat_wb)


# ---------------------------------------------------------------------------
# Parameter construction (deterministic, PyTorch-default-style uniform init)
# ---------------------------------------------------------------------------
def init_params(key):
    params = []
    for (cin, cout, k) in _TORCH_LAYER_CFG:
        key, kw, kb = jax.random.split(key, 3)
        bound = 1.0 / jnp.sqrt(cin * k)
        w = jax.random.uniform(kw, (cout, cin, k), jnp.float32, -bound, bound)
        b = jax.random.uniform(kb, (cout,), jnp.float32, -bound, bound)
        params.append((w, b))
    return params


if __name__ == "__main__":
    key = jax.random.PRNGKey(0)
    key, k1, k2, kp = jax.random.split(key, 4)

    B, L = 2, 16   # reflect pad requires L > 2 (max pad is 2), same as PyTorch
    a_vehicle = jax.random.normal(k1, (B, L), jnp.float32)
    v_wheel = jax.random.normal(k2, (B, L), jnp.float32)

    params = init_params(kp)
    out = neural_network_forward(a_vehicle, v_wheel, params)
    out = jax.block_until_ready(out)

    assert out.shape == (B, 1, L), out.shape
    assert out.dtype == jnp.float32
    assert bool(jnp.all(out >= 0.0))   # final ReLU
    print("KERNEL_OK")
</pallas_src>

<mosaic_0001>
module attributes {stable_mosaic.version = 11 : i64} {
  func.func @fused_conv_net_kernel(%arg0: i32, %arg1: memref<1x8x16xf32, #tpu.memory_space<vmem>>, %arg2: memref<16x24xf32, #tpu.memory_space<vmem>>, %arg3: memref<16x1xf32, #tpu.memory_space<vmem>>, %arg4: memref<32x80xf32, #tpu.memory_space<vmem>>, %arg5: memref<32x1xf32, #tpu.memory_space<vmem>>, %arg6: memref<64x160xf32, #tpu.memory_space<vmem>>, %arg7: memref<64x1xf32, #tpu.memory_space<vmem>>, %arg8: memref<64x320xf32, #tpu.memory_space<vmem>>, %arg9: memref<64x1xf32, #tpu.memory_space<vmem>>, %arg10: memref<64x320xf32, #tpu.memory_space<vmem>>, %arg11: memref<64x1xf32, #tpu.memory_space<vmem>>, %arg12: memref<192x1xf32, #tpu.memory_space<vmem>>, %arg13: memref<1x1xf32, #tpu.memory_space<vmem>>, %arg14: memref<1x1x16xf32, #tpu.memory_space<vmem>>) attributes {dimension_semantics = [#tpu.dimension_semantics<parallel>], iteration_bounds = array<i64: 2>, scalar_prefetch = 0 : i64, scratch_operands = 0 : i64, tpu.core_type = #tpu.core_type<tc>, window_params = [{transform_indices = @transform_0, window_bounds = array<i64: 1, 8, 16>}, {pipeline_mode = #tpu.pipeline_mode<synchronous>, transform_indices = @transform_1, window_bounds = array<i64: 16, 24>}, {pipeline_mode = #tpu.pipeline_mode<synchronous>, transform_indices = @transform_2, window_bounds = array<i64: 16, 1>}, {pipeline_mode = #tpu.pipeline_mode<synchronous>, transform_indices = @transform_3, window_bounds = array<i64: 32, 80>}, {pipeline_mode = #tpu.pipeline_mode<synchronous>, transform_indices = @transform_4, window_bounds = array<i64: 32, 1>}, {pipeline_mode = #tpu.pipeline_mode<synchronous>, transform_indices = @transform_5, window_bounds = array<i64: 64, 160>}, {pipeline_mode = #tpu.pipeline_mode<synchronous>, transform_indices = @transform_6, window_bounds = array<i64: 64, 1>}, {pipeline_mode = #tpu.pipeline_mode<synchronous>, transform_indices = @transform_7, window_bounds = array<i64: 64, 320>}, {pipeline_mode = #tpu.pipeline_mode<synchronous>, transform_indices = @transform_8, window_bounds = array<i64: 64, 1>}, {pipeline_mode = #tpu.pipeline_mode<synchronous>, transform_indices = @transform_9, window_bounds = array<i64: 64, 320>}, {pipeline_mode = #tpu.pipeline_mode<synchronous>, transform_indices = @transform_10, window_bounds = array<i64: 64, 1>}, {pipeline_mode = #tpu.pipeline_mode<synchronous>, transform_indices = @transform_11, window_bounds = array<i64: 192, 1>}, {pipeline_mode = #tpu.pipeline_mode<synchronous>, transform_indices = @transform_12, window_bounds = array<i64: 1, 1>}, {transform_indices = @transform_13, window_bounds = array<i64: 1, 1, 16>}]} {
    %c0 = arith.constant 0 : index
    %c0_0 = arith.constant 0 : index
    %c0_1 = arith.constant 0 : index
    %0 = vector.load %arg1[%c0, %c0_0, %c0_1] : memref<1x8x16xf32, #tpu.memory_space<vmem>>, vector<1x8x16xf32>
    %1 = vector.shape_cast %0 : vector<1x8x16xf32> to vector<8x16xf32>
    %c0_2 = arith.constant 0 : index
    %c0_3 = arith.constant 0 : index
    %2 = vector.load %arg2[%c0_2, %c0_3] : memref<16x24xf32, #tpu.memory_space<vmem>>, vector<16x24xf32>
    %c0_4 = arith.constant 0 : index
    %c0_5 = arith.constant 0 : index
    %3 = vector.load %arg3[%c0_4, %c0_5] : memref<16x1xf32, #tpu.memory_space<vmem>>, vector<16x1xf32>
    %4 = vector.extract_strided_slice %1 {offsets = [0, 1], sizes = [8, 1], strides = [1, 1]} : vector<8x16xf32> to vector<8x1xf32>
    %5 = vector.extract_strided_slice %1 {offsets = [0, 14], sizes = [8, 1], strides = [1, 1]} : vector<8x16xf32> to vector<8x1xf32>
    %6 = tpu.concatenate %4, %1, %5 in 1 : vector<8x1xf32>, vector<8x16xf32>, vector<8x1xf32> -> vector<8x18xf32>
    %7 = vector.extract_strided_slice %6 {offsets = [0, 0], sizes = [8, 16], strides = [1, 1]} : vector<8x18xf32> to vector<8x16xf32>
    %8 = vector.extract_strided_slice %6 {offsets = [0, 1], sizes = [8, 16], strides = [1, 1]} : vector<8x18xf32> to vector<8x16xf32>
    %9 = vector.extract_strided_slice %6 {offsets = [0, 2], sizes = [8, 16], strides = [1, 1]} : vector<8x18xf32> to vector<8x16xf32>
    %10 = tpu.concatenate %7, %8, %9 in 0 : vector<8x16xf32>, vector<8x16xf32>, vector<8x16xf32> -> vector<24x16xf32>
    %cst = arith.constant dense<0.000000e+00> : vector<16x16xf32>
    %11 = tpu.matmul %2, %10, %cst {dimension_numbers = #tpu.dot_dimension_numbers<[1], [0], [0], [1], [0, 0, 1, 1], [], []>} : vector<16x24xf32>, vector<24x16xf32>, vector<16x16xf32> -> vector<16x16xf32>
    %12 = vector.broadcast %3 : vector<16x1xf32> to vector<16x16xf32>
    %13 = arith.addf %11, %12 : vector<16x16xf32>
    %cst_6 = arith.constant 0.000000e+00 : f32
    %14 = vector.broadcast %cst_6 : f32 to vector<16x16xf32>
    %15 = arith.maximumf %13, %14 : vector<16x16xf32>
    %c0_7 = arith.constant 0 : index
    %c0_8 = arith.constant 0 : index
    %16 = vector.load %arg4[%c0_7, %c0_8] : memref<32x80xf32, #tpu.memory_space<vmem>>, vector<32x80xf32>
    %c0_9 = arith.constant 0 : index
    %c0_10 = arith.constant 0 : index
    %17 = vector.load %arg5[%c0_9, %c0_10] : memref<32x1xf32, #tpu.memory_space<vmem>>, vector<32x1xf32>
    %18 = vector.extract_strided_slice %15 {offsets = [0, 2], sizes = [16, 1], strides = [1, 1]} : vector<16x16xf32> to vector<16x1xf32>
    %19 = vector.extract_strided_slice %15 {offsets = [0, 1], sizes = [16, 1], strides = [1, 1]} : vector<16x16xf32> to vector<16x1xf32>
    %20 = vector.extract_strided_slice %15 {offsets = [0, 14], sizes = [16, 1], strides = [1, 1]} : vector<16x16xf32> to vector<16x1xf32>
    %21 = vector.extract_strided_slice %15 {offsets = [0, 13], sizes = [16, 1], strides = [1, 1]} : vector<16x16xf32> to vector<16x1xf32>
    %22 = tpu.concatenate %18, %19, %15, %20, %21 in 1 : vector<16x1xf32>, vector<16x1xf32>, vector<16x16xf32>, vector<16x1xf32>, vector<16x1xf32> -> vector<16x20xf32>
    %23 = vector.extract_strided_slice %22 {offsets = [0, 0], sizes = [16, 16], strides = [1, 1]} : vector<16x20xf32> to vector<16x16xf32>
    %24 = vector.extract_strided_slice %22 {offsets = [0, 1], sizes = [16, 16], strides = [1, 1]} : vector<16x20xf32> to vector<16x16xf32>
    %25 = vector.extract_strided_slice %22 {offsets = [0, 2], sizes = [16, 16], strides = [1, 1]} : vector<16x20xf32> to vector<16x16xf32>
    %26 = vector.extract_strided_slice %22 {offsets = [0, 3], sizes = [16, 16], strides = [1, 1]} : vector<16x20xf32> to vector<16x16xf32>
    %27 = vector.extract_strided_slice %22 {offsets = [0, 4], sizes = [16, 16], strides = [1, 1]} : vector<16x20xf32> to vector<16x16xf32>
    %28 = tpu.concatenate %23, %24, %25, %26, %27 in 0 : vector<16x16xf32>, vector<16x16xf32>, vector<16x16xf32>, vector<16x16xf32>, vector<16x16xf32> -> vector<80x16xf32>
    %cst_11 = arith.constant dense<0.000000e+00> : vector<32x16xf32>
    %29 = tpu.matmul %16, %28, %cst_11 {dimension_numbers = #tpu.dot_dimension_numbers<[1], [0], [0], [1], [0, 0, 1, 1], [], []>} : vector<32x80xf32>, vector<80x16xf32>, vector<32x16xf32> -> vector<32x16xf32>
    %30 = vector.broadcast %17 : vector<32x1xf32> to vector<32x16xf32>
    %31 = arith.addf %29, %30 : vector<32x16xf32>
    %cst_12 = arith.constant 0.000000e+00 : f32
    %32 = vector.broadcast %cst_12 : f32 to vector<32x16xf32>
    %33 = arith.maximumf %31, %32 : vector<32x16xf32>
    %c0_13 = arith.constant 0 : index
    %c0_14 = arith.constant 0 : index
    %34 = vector.load %arg6[%c0_13, %c0_14] : memref<64x160xf32, #tpu.memory_space<vmem>>, vector<64x160xf32>
    %c0_15 = arith.constant 0 : index
    %c0_16 = arith.constant 0 : index
    %35 = vector.load %arg7[%c0_15, %c0_16] : memref<64x1xf32, #tpu.memory_space<vmem>>, vector<64x1xf32>
    %36 = vector.extract_strided_slice %33 {offsets = [0, 2], sizes = [32, 1], strides = [1, 1]} : vector<32x16xf32> to vector<32x1xf32>
    %37 = vector.extract_strided_slice %33 {offsets = [0, 1], sizes = [32, 1], strides = [1, 1]} : vector<32x16xf32> to vector<32x1xf32>
    %38 = vector.extract_strided_slice %33 {offsets = [0, 14], sizes = [32, 1], strides = [1, 1]} : vector<32x16xf32> to vector<32x1xf32>
    %39 = vector.extract_strided_slice %33 {offsets = [0, 13], sizes = [32, 1], strides = [1, 1]} : vector<32x16xf32> to vector<32x1xf32>
    %40 = tpu.concatenate %36, %37, %33, %38, %39 in 1 : vector<32x1xf32>, vector<32x1xf32>, vector<32x16xf32>, vector<32x1xf32>, vector<32x1xf32> -> vector<32x20xf32>
    %41 = vector.extract_strided_slice %40 {offsets = [0, 0], sizes = [32, 16], strides = [1, 1]} : vector<32x20xf32> to vector<32x16xf32>
    %42 = vector.extract_strided_slice %40 {offsets = [0, 1], sizes = [32, 16], strides = [1, 1]} : vector<32x20xf32> to vector<32x16xf32>
    %43 = vector.extract_strided_slice %40 {offsets = [0, 2], sizes = [32, 16], strides = [1, 1]} : vector<32x20xf32> to vector<32x16xf32>
    %44 = vector.extract_strided_slice %40 {offsets = [0, 3], sizes = [32, 16], strides = [1, 1]} : vector<32x20xf32> to vector<32x16xf32>
    %45 = vector.extract_strided_slice %40 {offsets = [0, 4], sizes = [32, 16], strides = [1, 1]} : vector<32x20xf32> to vector<32x16xf32>
    %46 = tpu.concatenate %41, %42, %43, %44, %45 in 0 : vector<32x16xf32>, vector<32x16xf32>, vector<32x16xf32>, vector<32x16xf32>, vector<32x16xf32> -> vector<160x16xf32>
    %cst_17 = arith.constant dense<0.000000e+00> : vector<64x16xf32>
    %47 = tpu.matmul %34, %46, %cst_17 {dimension_numbers = #tpu.dot_dimension_numbers<[1], [0], [0], [1], [0, 0, 1, 1], [], []>} : vector<64x160xf32>, vector<160x16xf32>, vector<64x16xf32> -> vector<64x16xf32>
    %48 = vector.broadcast %35 : vector<64x1xf32> to vector<64x16xf32>
    %49 = arith.addf %47, %48 : vector<64x16xf32>
    %cst_18 = arith.constant 0.000000e+00 : f32
    %50 = vector.broadcast %cst_18 : f32 to vector<64x16xf32>
    %51 = arith.maximumf %49, %50 : vector<64x16xf32>
    %c0_19 = arith.constant 0 : index
    %c0_20 = arith.constant 0 : index
    %52 = vector.load %arg8[%c0_19, %c0_20] : memref<64x320xf32, #tpu.memory_space<vmem>>, vector<64x320xf32>
    %c0_21 = arith.constant 0 : index
    %c0_22 = arith.constant 0 : index
    %53 = vector.load %arg9[%c0_21, %c0_22] : memref<64x1xf32, #tpu.memory_space<vmem>>, vector<64x1xf32>
    %54 = vector.extract_strided_slice %51 {offsets = [0, 2], sizes = [64, 1], strides = [1, 1]} : vector<64x16xf32> to vector<64x1xf32>
    %55 = vector.extract_strided_slice %51 {offsets = [0, 1], sizes = [64, 1], strides = [1, 1]} : vector<64x16xf32> to vector<64x1xf32>
    %56 = vector.extract_strided_slice %51 {offsets = [0, 14], sizes = [64, 1], strides = [1, 1]} : vector<64x16xf32> to vector<64x1xf32>
    %57 = vector.extract_strided_slice %51 {offsets = [0, 13], sizes = [64, 1], strides = [1, 1]} : vector<64x16xf32> to vector<64x1xf32>
    %58 = tpu.concatenate %54, %55, %51, %56, %57 in 1 : vector<64x1xf32>, vector<64x1xf32>, vector<64x16xf32>, vector<64x1xf32>, vector<64x1xf32> -> vector<64x20xf32>
    %59 = vector.extract_strided_slice %58 {offsets = [0, 0], sizes = [64, 16], strides = [1, 1]} : vector<64x20xf32> to vector<64x16xf32>
    %60 = vector.extract_strided_slice %58 {offsets = [0, 1], sizes = [64, 16], strides = [1, 1]} : vector<64x20xf32> to vector<64x16xf32>
    %61 = vector.extract_strided_slice %58 {offsets = [0, 2], sizes = [64, 16], strides = [1, 1]} : vector<64x20xf32> to vector<64x16xf32>
    %62 = vector.extract_strided_slice %58 {offsets = [0, 3], sizes = [64, 16], strides = [1, 1]} : vector<64x20xf32> to vector<64x16xf32>
    %63 = vector.extract_strided_slice %58 {offsets = [0, 4], sizes = [64, 16], strides = [1, 1]} : vector<64x20xf32> to vector<64x16xf32>
    %64 = tpu.concatenate %59, %60, %61, %62, %63 in 0 : vector<64x16xf32>, vector<64x16xf32>, vector<64x16xf32>, vector<64x16xf32>, vector<64x16xf32> -> vector<320x16xf32>
    %cst_23 = arith.constant dense<0.000000e+00> : vector<64x16xf32>
    %65 = tpu.matmul %52, %64, %cst_23 {dimension_numbers = #tpu.dot_dimension_numbers<[1], [0], [0], [1], [0, 0, 1, 1], [], []>} : vector<64x320xf32>, vector<320x16xf32>, vector<64x16xf32> -> vector<64x16xf32>
    %66 = vector.broadcast %53 : vector<64x1xf32> to vector<64x16xf32>
    %67 = arith.addf %65, %66 : vector<64x16xf32>
    %cst_24 = arith.constant 0.000000e+00 : f32
    %68 = vector.broadcast %cst_24 : f32 to vector<64x16xf32>
    %69 = arith.maximumf %67, %68 : vector<64x16xf32>
    %c0_25 = arith.constant 0 : index
    %c0_26 = arith.constant 0 : index
    %70 = vector.load %arg10[%c0_25, %c0_26] : memref<64x320xf32, #tpu.memory_space<vmem>>, vector<64x320xf32>
    %c0_27 = arith.constant 0 : index
    %c0_28 = arith.constant 0 : index
    %71 = vector.load %arg11[%c0_27, %c0_28] : memref<64x1xf32, #tpu.memory_space<vmem>>, vector<64x1xf32>
    %72 = vector.extract_strided_slice %69 {offsets = [0, 2], sizes = [64, 1], strides = [1, 1]} : vector<64x16xf32> to vector<64x1xf32>
    %73 = vector.extract_strided_slice %69 {offsets = [0, 1], sizes = [64, 1], strides = [1, 1]} : vector<64x16xf32> to vector<64x1xf32>
    %74 = vector.extract_strided_slice %69 {offsets = [0, 14], sizes = [64, 1], strides = [1, 1]} : vector<64x16xf32> to vector<64x1xf32>
    %75 = vector.extract_strided_slice %69 {offsets = [0, 13], sizes = [64, 1], strides = [1, 1]} : vector<64x16xf32> to vector<64x1xf32>
    %76 = tpu.concatenate %72, %73, %69, %74, %75 in 1 : vector<64x1xf32>, vector<64x1xf32>, vector<64x16xf32>, vector<64x1xf32>, vector<64x1xf32> -> vector<64x20xf32>
    %77 = vector.extract_strided_slice %76 {offsets = [0, 0], sizes = [64, 16], strides = [1, 1]} : vector<64x20xf32> to vector<64x16xf32>
    %78 = vector.extract_strided_slice %76 {offsets = [0, 1], sizes = [64, 16], strides = [1, 1]} : vector<64x20xf32> to vector<64x16xf32>
    %79 = vector.extract_strided_slice %76 {offsets = [0, 2], sizes = [64, 16], strides = [1, 1]} : vector<64x20xf32> to vector<64x16xf32>
    %80 = vector.extract_strided_slice %76 {offsets = [0, 3], sizes = [64, 16], strides = [1, 1]} : vector<64x20xf32> to vector<64x16xf32>
    %81 = vector.extract_strided_slice %76 {offsets = [0, 4], sizes = [64, 16], strides = [1, 1]} : vector<64x20xf32> to vector<64x16xf32>
    %82 = tpu.concatenate %77, %78, %79, %80, %81 in 0 : vector<64x16xf32>, vector<64x16xf32>, vector<64x16xf32>, vector<64x16xf32>, vector<64x16xf32> -> vector<320x16xf32>
    %cst_29 = arith.constant dense<0.000000e+00> : vector<64x16xf32>
    %83 = tpu.matmul %70, %82, %cst_29 {dimension_numbers = #tpu.dot_dimension_numbers<[1], [0], [0], [1], [0, 0, 1, 1], [], []>} : vector<64x320xf32>, vector<320x16xf32>, vector<64x16xf32> -> vector<64x16xf32>
    %84 = vector.broadcast %71 : vector<64x1xf32> to vector<64x16xf32>
    %85 = arith.addf %83, %84 : vector<64x16xf32>
    %cst_30 = arith.constant 0.000000e+00 : f32
    %86 = vector.broadcast %cst_30 : f32 to vector<64x16xf32>
    %87 = arith.maximumf %85, %86 : vector<64x16xf32>
    %c0_31 = arith.constant 0 : index
    %c0_32 = arith.constant 0 : index
    %88 = vector.load %arg12[%c0_31, %c0_32] : memref<192x1xf32, #tpu.memory_space<vmem>>, vector<192x1xf32>
    %c0_33 = arith.constant 0 : index
    %c0_34 = arith.constant 0 : index
    %89 = vector.load %arg13[%c0_33, %c0_34] : memref<1x1xf32, #tpu.memory_space<vmem>>, vector<1x1xf32>
    %90 = vector.extract_strided_slice %87 {offsets = [0, 1], sizes = [64, 1], strides = [1, 1]} : vector<64x16xf32> to vector<64x1xf32>
    %91 = vector.extract_strided_slice %87 {offsets = [0, 14], sizes = [64, 1], strides = [1, 1]} : vector<64x16xf32> to vector<64x1xf32>
    %92 = tpu.concatenate %90, %87, %91 in 1 : vector<64x1xf32>, vector<64x16xf32>, vector<64x1xf32> -> vector<64x18xf32>
    %93 = vector.extract_strided_slice %92 {offsets = [0, 0], sizes = [64, 16], strides = [1, 1]} : vector<64x18xf32> to vector<64x16xf32>
    %94 = vector.extract_strided_slice %92 {offsets = [0, 1], sizes = [64, 16], strides = [1, 1]} : vector<64x18xf32> to vector<64x16xf32>
    %95 = vector.extract_strided_slice %92 {offsets = [0, 2], sizes = [64, 16], strides = [1, 1]} : vector<64x18xf32> to vector<64x16xf32>
    %96 = tpu.concatenate %93, %94, %95 in 0 : vector<64x16xf32>, vector<64x16xf32>, vector<64x16xf32> -> vector<192x16xf32>
    %97 = vector.broadcast %88 : vector<192x1xf32> to vector<192x16xf32>
    %98 = arith.mulf %97, %96 : vector<192x16xf32>
    %cst_35 = arith.constant dense<0.000000e+00> : vector<16xf32>
    %99 = vector.multi_reduction <add>, %98, %cst_35 [0] : vector<192x16xf32> to vector<16xf32>
    %100 = vector.shape_cast %99 : vector<16xf32> to vector<1x16xf32>
    %101 = vector.broadcast %89 : vector<1x1xf32> to vector<1x16xf32>
    %102 = arith.addf %100, %101 : vector<1x16xf32>
    %cst_36 = arith.constant 0.000000e+00 : f32
    %103 = vector.broadcast %cst_36 : f32 to vector<1x16xf32>
    %104 = arith.maximumf %102, %103 : vector<1x16xf32>
    %c0_37 = arith.constant 0 : index
    %c0_38 = arith.constant 0 : index
    %c0_39 = arith.constant 0 : index
    %105 = vector.load %arg14[%c0_37, %c0_38, %c0_39] : memref<1x1x16xf32, #tpu.memory_space<vmem>>, vector<1x1x16xf32>
    %106 = vector.shape_cast %105 : vector<1x1x16xf32> to vector<1x16xf32>
    %107 = vector.shape_cast %104 : vector<1x16xf32> to vector<1x1x16xf32>
    tpu.vector_store %arg14[%c0_37, %c0_38, %c0_39], %107 {strides = array<i32>} : memref<1x1x16xf32, #tpu.memory_space<vmem>>, vector<1x1x16xf32>,
    return
  }
  func.func @transform_0(%arg0: i32) -> (i32, i32, i32) {
    %c0_i32 = arith.constant 0 : i32
    %c0_i32_0 = arith.constant 0 : i32
    %c0_i32_1 = arith.constant 0 : i32
    return %arg0, %c0_i32, %c0_i32_0 : i32, i32, i32
  }
  func.func @transform_1(%arg0: i32) -> (i32, i32) {
    %c0_i32 = arith.constant 0 : i32
    %c0_i32_0 = arith.constant 0 : i32
    %c0_i32_1 = arith.constant 0 : i32
    return %c0_i32, %c0_i32_0 : i32, i32
  }
  func.func @transform_2(%arg0: i32) -> (i32, i32) {
    %c0_i32 = arith.constant 0 : i32
    %c0_i32_0 = arith.constant 0 : i32
    %c0_i32_1 = arith.constant 0 : i32
    return %c0_i32, %c0_i32_0 : i32, i32
  }
  func.func @transform_3(%arg0: i32) -> (i32, i32) {
    %c0_i32 = arith.constant 0 : i32
    %c0_i32_0 = arith.constant 0 : i32
    %c0_i32_1 = arith.constant 0 : i32
    return %c0_i32, %c0_i32_0 : i32, i32
  }
  func.func @transform_4(%arg0: i32) -> (i32, i32) {
    %c0_i32 = arith.constant 0 : i32
    %c0_i32_0 = arith.constant 0 : i32
    %c0_i32_1 = arith.constant 0 : i32
    return %c0_i32, %c0_i32_0 : i32, i32
  }
  func.func @transform_5(%arg0: i32) -> (i32, i32) {
    %c0_i32 = arith.constant 0 : i32
    %c0_i32_0 = arith.constant 0 : i32
    %c0_i32_1 = arith.constant 0 : i32
    return %c0_i32, %c0_i32_0 : i32, i32
  }
  func.func @transform_6(%arg0: i32) -> (i32, i32) {
    %c0_i32 = arith.constant 0 : i32
    %c0_i32_0 = arith.constant 0 : i32
    %c0_i32_1 = arith.constant 0 : i32
    return %c0_i32, %c0_i32_0 : i32, i32
  }
  func.func @transform_7(%arg0: i32) -> (i32, i32) {
    %c0_i32 = arith.constant 0 : i32
    %c0_i32_0 = arith.constant 0 : i32
    %c0_i32_1 = arith.constant 0 : i32
    return %c0_i32, %c0_i32_0 : i32, i32
  }
  func.func @transform_8(%arg0: i32) -> (i32, i32) {
    %c0_i32 = arith.constant 0 : i32
    %c0_i32_0 = arith.constant 0 : i32
    %c0_i32_1 = arith.constant 0 : i32
    return %c0_i32, %c0_i32_0 : i32, i32
  }
  func.func @transform_9(%arg0: i32) -> (i32, i32) {
    %c0_i32 = arith.constant 0 : i32
    %c0_i32_0 = arith.constant 0 : i32
    %c0_i32_1 = arith.constant 0 : i32
    return %c0_i32, %c0_i32_0 : i32, i32
  }
  func.func @transform_10(%arg0: i32) -> (i32, i32) {
    %c0_i32 = arith.constant 0 : i32
    %c0_i32_0 = arith.constant 0 : i32
    %c0_i32_1 = arith.constant 0 : i32
    return %c0_i32, %c0_i32_0 : i32, i32
  }
  func.func @transform_11(%arg0: i32) -> (i32, i32) {
    %c0_i32 = arith.constant 0 : i32
    %c0_i32_0 = arith.constant 0 : i32
    %c0_i32_1 = arith.constant 0 : i32
    return %c0_i32, %c0_i32_0 : i32, i32
  }
  func.func @transform_12(%arg0: i32) -> (i32, i32) {
    %c0_i32 = arith.constant 0 : i32
    %c0_i32_0 = arith.constant 0 : i32
    %c0_i32_1 = arith.constant 0 : i32
    return %c0_i32, %c0_i32_0 : i32, i32
  }
  func.func @transform_13(%arg0: i32) -> (i32, i32, i32) {
    %c0_i32 = arith.constant 0 : i32
    %c0_i32_0 = arith.constant 0 : i32
    %c0_i32_1 = arith.constant 0 : i32
    return %arg0, %c0_i32, %c0_i32_0 : i32, i32, i32
  }
}

</mosaic_0001>

<llo_original>
// kernel: neural_network_forward.1
$region0: #{neural_network_forward.1}
  #allocation0 [shape = 'u32[]', space=smem, size = 0x4, offset = 0x4, fixed_abs, tag = 'smem constant byte address 0x4 - core index']
  #allocation1 [shape = 'u32[72,128]{1,0:T(1,128)}', space=vmem, size = 0x9000, scoped, tag = 'internal scratch']
  #allocation2 [shape = 'f32[1,1]{1,0:T(1,128)S(1)}', space=vmem, size = 0x200, scoped, tag = 'scoped memory for neural_network_forward.1']
  %s0 = inlined_call_operand.vmem [shape: f32[2,8,16], index: 0, kind: input, shape index: {}]
  %s1 = inlined_call_operand.vmem [shape: f32[16,24], index: 1, kind: input, shape index: {}]
  %s2 = inlined_call_operand.vmem [shape: f32[16,1], index: 2, kind: input, shape index: {}]
  %s3 = inlined_call_operand.vmem [shape: f32[32,80], index: 3, kind: input, shape index: {}]
  %s4 = inlined_call_operand.vmem [shape: f32[32,1], index: 4, kind: input, shape index: {}]
  %s5 = inlined_call_operand.vmem [shape: f32[64,160], index: 5, kind: input, shape index: {}]
  %s6 = inlined_call_operand.vmem [shape: f32[64,1], index: 6, kind: input, shape index: {}]
  %s7 = inlined_call_operand.vmem [shape: f32[64,320], index: 7, kind: input, shape index: {}]
  %s8 = inlined_call_operand.vmem [shape: f32[64,1], index: 8, kind: input, shape index: {}]
  %s9 = inlined_call_operand.vmem [shape: f32[64,320], index: 9, kind: input, shape index: {}]
  %s10 = inlined_call_operand.vmem [shape: f32[64,1], index: 10, kind: input, shape index: {}]
  %s11 = inlined_call_operand.vmem [shape: f32[192,1], index: 11, kind: input, shape index: {}]
  %s12 = inlined_call_operand.<no memory space> [shape: f32[1,1], index: 12, kind: input, shape index: {}]
  %s13 = inlined_call_operand.hbm [shape: f32[2,1,16], index: 13, kind: output, shape index: {}]
  %s14 = sld [smem:[#allocation0]]
  $region85: #{neural_network_forward.1} parent=0
    _
  %s16 = ssub.s32 1, %s14
  %s17 = scalar_select 0, %s16, %s14
  %v18 = vstv %s12
  %19 = vst [vmem:[#allocation2] sm:$0x1] %v18
  $region1: #{neural_network_forward.1} parent=0
    #allocation3 [shape = 'u8[1024]{0}', space=vmem, size = 0x400, scoped, tag = 'output window, operand 0']
    #allocation4 [shape = 's32[2]{0}', space=sflag, size = 0x8, scoped, tag = 'scoped memory for neural_network_forward.1']
    %20 = vsyncpa [#allocation4], 0
    %s21 = scalar_lea.sflag [#allocation4], 1
    %22 = vsyncpa %s21, 0
    loop: start=0, step=1, limit=4
    $region2: #{neural_network_forward.1} parent=1 // loop_pre_header
      _
    $region3: #{neural_network_forward.1} parent=1 // loop_header
      %s24 = sphi 0, %s28
      %p25 = scmp.ge.s32.totalorder %s24, 4
      %s34 = sphi 0, %s36
      %s37 = sphi 0, %s34
      %s38 = sphi 0, %s37
      %s54 = sphi 0, %s38
      %s58 = sphi 0, %s58
      %s60 = sphi 0, %s58
      %s61 = sphi 0, %s60
      %s75 = sphi 0, %s61
      %s79 = sphi 0, %s79
      %s81 = sphi 0, %s79
      %s82 = sphi 0, %s81
      %s96 = sphi 0, %s82
      %s100 = sphi 0, %s100
      %s102 = sphi 0, %s100
      %s103 = sphi 0, %s102
      %s117 = sphi 0, %s103
      %s121 = sphi 0, %s121
      %s123 = sphi 0, %s121
      %s124 = sphi 0, %s123
      %s138 = sphi 0, %s124
      %s142 = sphi 0, %s142
      %s144 = sphi 0, %s142
      %s145 = sphi 0, %s144
      %s159 = sphi 0, %s145
      %s163 = sphi 0, %s163
      %s165 = sphi 0, %s163
      %s166 = sphi 0, %s165
      %s180 = sphi 0, %s166
      %s184 = sphi 0, %s184
      %s186 = sphi 0, %s184
      %s187 = sphi 0, %s186
      %s201 = sphi 0, %s187
      %s205 = sphi 0, %s205
      %s207 = sphi 0, %s205
      %s208 = sphi 0, %s207
      %s222 = sphi 0, %s208
      %s226 = sphi 0, %s226
      %s228 = sphi 0, %s226
      %s229 = sphi 0, %s228
      %s243 = sphi 0, %s229
      %s247 = sphi 0, %s247
      %s249 = sphi 0, %s247
      %s250 = sphi 0, %s249
      %s264 = sphi 0, %s250
      %s268 = sphi 0, %s268
      %s270 = sphi 0, %s268
      %s271 = sphi 0, %s270
      %s285 = sphi 0, %s271
      %s289 = sphi 0, %s289
      %s291 = sphi 0, %s289
      %s292 = sphi 0, %s291
      %s306 = sphi 0, %s292
      %s312 = sphi 0, %s314
      %s315 = sphi 0, %s312
      %s316 = sphi 0, %s315
      %s332 = sphi 0, %s316
    $region4: #{neural_network_forward.1} parent=1 // loop_header_branch
      %27 = sbr.rel (%p25) target = $region8
    $region5: #{neural_network_forward.1} parent=1 // loop_body
      %s29 = ssub.s32 %s24, 1
      %s30 = ssub.s32 %s24, 2
      %s31 = sadd.s32 %s24, 1
      %s32 = ssub.s32 %s24, %s31
      %p33 = scmp.eq.s32.totalorder %s32, 0
      %s35 = sadd.s32 %s34, 1
      %s36 = scalar_select %p33, %s34, %s35
      %p39 = pneg %p33
      %p40 = scmp.eq.s32.totalorder %s24, 1
      %p41 = por %p39, %p40
      %p42 = scmp.ne.s32.totalorder %s34, %s37
      %p43 = scmp.eq.s32.totalorder %s24, 0
      %p44 = por %p42, %p43
      %p45 = scmp.ne.s32.totalorder %s34, %s37
      %p46 = scmp.eq.s32.totalorder %s29, 1
      %p47 = por %p45, %p46
      %p48 = scmp.ne.s32.totalorder %s37, %s38
      %p49 = scmp.eq.s32.totalorder %s29, 0
      %p50 = por %p48, %p49
      %p51 = scmp.ne.s32.totalorder %s37, %s38
      %p52 = scmp.eq.s32.totalorder %s30, 1
      %p53 = por %p51, %p52
      %p55 = scmp.ne.s32.totalorder %s38, %s54
      %p56 = scmp.eq.s32.totalorder %s30, 0
      %p57 = por %p55, %p56
      %s59 = sadd.s32 %s58, 1
      %p62 = scmp.eq.s32.totalorder %s24, 1
      %p63 = scmp.ne.s32.totalorder %s58, %s60
      %p64 = scmp.eq.s32.totalorder %s24, 0
      %p65 = por %p63, %p64
      %p66 = scmp.ne.s32.totalorder %s58, %s60
      %p67 = scmp.eq.s32.totalorder %s29, 1
      %p68 = por %p66, %p67
      %p69 = scmp.ne.s32.totalorder %s60, %s61
      %p70 = scmp.eq.s32.totalorder %s29, 0
      %p71 = por %p69, %p70
      %p72 = scmp.ne.s32.totalorder %s60, %s61
      %p73 = scmp.eq.s32.totalorder %s30, 1
      %p74 = por %p72, %p73
      %p76 = scmp.ne.s32.totalorder %s61, %s75
      %p77 = scmp.eq.s32.totalorder %s30, 0
      %p78 = por %p76, %p77
      %s80 = sadd.s32 %s79, 1
      %p83 = scmp.eq.s32.totalorder %s24, 1
      %p84 = scmp.ne.s32.totalorder %s79, %s81
      %p85 = scmp.eq.s32.totalorder %s24, 0
      %p86 = por %p84, %p85
      %p87 = scmp.ne.s32.totalorder %s79, %s81
      %p88 = scmp.eq.s32.totalorder %s29, 1
      %p89 = por %p87, %p88
      %p90 = scmp.ne.s32.totalorder %s81, %s82
      %p91 = scmp.eq.s32.totalorder %s29, 0
      %p92 = por %p90, %p91
      %p93 = scmp.ne.s32.totalorder %s81, %s82
      %p94 = scmp.eq.s32.totalorder %s30, 1
      %p95 = por %p93, %p94
      %p97 = scmp.ne.s32.totalorder %s82, %s96
      %p98 = scmp.eq.s32.totalorder %s30, 0
      %p99 = por %p97, %p98
      %s101 = sadd.s32 %s100, 1
      %p104 = scmp.eq.s32.totalorder %s24, 1
      %p105 = scmp.ne.s32.totalorder %s100, %s102
      %p106 = scmp.eq.s32.totalorder %s24, 0
      %p107 = por %p105, %p106
      %p108 = scmp.ne.s32.totalorder %s100, %s102
      %p109 = scmp.eq.s32.totalorder %s29, 1
      %p110 = por %p108, %p109
      %p111 = scmp.ne.s32.totalorder %s102, %s103
      %p112 = scmp.eq.s32.totalorder %s29, 0
      %p113 = por %p111, %p112
      %p114 = scmp.ne.s32.totalorder %s102, %s103
      %p115 = scmp.eq.s32.totalorder %s30, 1
      %p116 = por %p114, %p115
      %p118 = scmp.ne.s32.totalorder %s103, %s117
      %p119 = scmp.eq.s32.totalorder %s30, 0
      %p120 = por %p118, %p119
      %s122 = sadd.s32 %s121, 1
      %p125 = scmp.eq.s32.totalorder %s24, 1
      %p126 = scmp.ne.s32.totalorder %s121, %s123
      %p127 = scmp.eq.s32.totalorder %s24, 0
      %p128 = por %p126, %p127
      %p129 = scmp.ne.s32.totalorder %s121, %s123
      %p130 = scmp.eq.s32.totalorder %s29, 1
      %p131 = por %p129, %p130
      %p132 = scmp.ne.s32.totalorder %s123, %s124
      %p133 = scmp.eq.s32.totalorder %s29, 0
      %p134 = por %p132, %p133
      %p135 = scmp.ne.s32.totalorder %s123, %s124
      %p136 = scmp.eq.s32.totalorder %s30, 1
      %p137 = por %p135, %p136
      %p139 = scmp.ne.s32.totalorder %s124, %s138
      %p140 = scmp.eq.s32.totalorder %s30, 0
      %p141 = por %p139, %p140
      %s143 = sadd.s32 %s142, 1
      %p146 = scmp.eq.s32.totalorder %s24, 1
      %p147 = scmp.ne.s32.totalorder %s142, %s144
      %p148 = scmp.eq.s32.totalorder %s24, 0
      %p149 = por %p147, %p148
      %p150 = scmp.ne.s32.totalorder %s142, %s144
      %p151 = scmp.eq.s32.totalorder %s29, 1
      %p152 = por %p150, %p151
      %p153 = scmp.ne.s32.totalorder %s144, %s145
      %p154 = scmp.eq.s32.totalorder %s29, 0
      %p155 = por %p153, %p154
      %p156 = scmp.ne.s32.totalorder %s144, %s145
      %p157 = scmp.eq.s32.totalorder %s30, 1
      %p158 = por %p156, %p157
      %p160 = scmp.ne.s32.totalorder %s145, %s159
      %p161 = scmp.eq.s32.totalorder %s30, 0
      %p162 = por %p160, %p161
      %s164 = sadd.s32 %s163, 1
      %p167 = scmp.eq.s32.totalorder %s24, 1
      %p168 = scmp.ne.s32.totalorder %s163, %s165
      %p169 = scmp.eq.s32.totalorder %s24, 0
      %p170 = por %p168, %p169
      %p171 = scmp.ne.s32.totalorder %s163, %s165
      %p172 = scmp.eq.s32.totalorder %s29, 1
      %p173 = por %p171, %p172
      %p174 = scmp.ne.s32.totalorder %s165, %s166
      %p175 = scmp.eq.s32.totalorder %s29, 0
      %p176 = por %p174, %p175
      %p177 = scmp.ne.s32.totalorder %s165, %s166
      %p178 = scmp.eq.s32.totalorder %s30, 1
      %p179 = por %p177, %p178
      %p181 = scmp.ne.s32.totalorder %s166, %s180
      %p182 = scmp.eq.s32.totalorder %s30, 0
      %p183 = por %p181, %p182
      %s185 = sadd.s32 %s184, 1
      %p188 = scmp.eq.s32.totalorder %s24, 1
      %p189 = scmp.ne.s32.totalorder %s184, %s186
      %p190 = scmp.eq.s32.totalorder %s24, 0
      %p191 = por %p189, %p190
      %p192 = scmp.ne.s32.totalorder %s184, %s186
      %p193 = scmp.eq.s32.totalorder %s29, 1
      %p194 = por %p192, %p193
      %p195 = scmp.ne.s32.totalorder %s186, %s187
      %p196 = scmp.eq.s32.totalorder %s29, 0
      %p197 = por %p195, %p196
      %p198 = scmp.ne.s32.totalorder %s186, %s187
      %p199 = scmp.eq.s32.totalorder %s30, 1
      %p200 = por %p198, %p199
      %p202 = scmp.ne.s32.totalorder %s187, %s201
      %p203 = scmp.eq.s32.totalorder %s30, 0
      %p204 = por %p202, %p203
      %s206 = sadd.s32 %s205, 1
      %p209 = scmp.eq.s32.totalorder %s24, 1
      %p210 = scmp.ne.s32.totalorder %s205, %s207
      %p211 = scmp.eq.s32.totalorder %s24, 0
      %p212 = por %p210, %p211
      %p213 = scmp.ne.s32.totalorder %s205, %s207
      %p214 = scmp.eq.s32.totalorder %s29, 1
      %p215 = por %p213, %p214
      %p216 = scmp.ne.s32.totalorder %s207, %s208
      %p217 = scmp.eq.s32.totalorder %s29, 0
      %p218 = por %p216, %p217
      %p219 = scmp.ne.s32.totalorder %s207, %s208
      %p220 = scmp.eq.s32.totalorder %s30, 1
      %p221 = por %p219, %p220
      %p223 = scmp.ne.s32.totalorder %s208, %s222
      %p224 = scmp.eq.s32.totalorder %s30, 0
      %p225 = por %p223, %p224
      %s227 = sadd.s32 %s226, 1
      %p230 = scmp.eq.s32.totalorder %s24, 1
      %p231 = scmp.ne.s32.totalorder %s226, %s228
      %p232 = scmp.eq.s32.totalorder %s24, 0
      %p233 = por %p231, %p232
      %p234 = scmp.ne.s32.totalorder %s226, %s228
      %p235 = scmp.eq.s32.totalorder %s29, 1
      %p236 = por %p234, %p235
      %p237 = scmp.ne.s32.totalorder %s228, %s229
      %p238 = scmp.eq.s32.totalorder %s29, 0
      %p239 = por %p237, %p238
      %p240 = scmp.ne.s32.totalorder %s228, %s229
      %p241 = scmp.eq.s32.totalorder %s30, 1
      %p242 = por %p240, %p241
      %p244 = scmp.ne.s32.totalorder %s229, %s243
      %p245 = scmp.eq.s32.totalorder %s30, 0
      %p246 = por %p244, %p245
      %s248 = sadd.s32 %s247, 1
      %p251 = scmp.eq.s32.totalorder %s24, 1
      %p252 = scmp.ne.s32.totalorder %s247, %s249
      %p253 = scmp.eq.s32.totalorder %s24, 0
      %p254 = por %p252, %p253
      %p255 = scmp.ne.s32.totalorder %s247, %s249
      %p256 = scmp.eq.s32.totalorder %s29, 1
      %p257 = por %p255, %p256
      %p258 = scmp.ne.s32.totalorder %s249, %s250
      %p259 = scmp.eq.s32.totalorder %s29, 0
      %p260 = por %p258, %p259
      %p261 = scmp.ne.s32.totalorder %s249, %s250
      %p262 = scmp.eq.s32.totalorder %s30, 1
      %p263 = por %p261, %p262
      %p265 = scmp.ne.s32.totalorder %s250, %s264
      %p266 = scmp.eq.s32.totalorder %s30, 0
      %p267 = por %p265, %p266
      %s269 = sadd.s32 %s268, 1
      %p272 = scmp.eq.s32.totalorder %s24, 1
      %p273 = scmp.ne.s32.totalorder %s268, %s270
      %p274 = scmp.eq.s32.totalorder %s24, 0
      %p275 = por %p273, %p274
      %p276 = scmp.ne.s32.totalorder %s268, %s270
      %p277 = scmp.eq.s32.totalorder %s29, 1
      %p278 = por %p276, %p277
      %p279 = scmp.ne.s32.totalorder %s270, %s271
      %p280 = scmp.eq.s32.totalorder %s29, 0
      %p281 = por %p279, %p280
      %p282 = scmp.ne.s32.totalorder %s270, %s271
      %p283 = scmp.eq.s32.totalorder %s30, 1
      %p284 = por %p282, %p283
      %p286 = scmp.ne.s32.totalorder %s271, %s285
      %p287 = scmp.eq.s32.totalorder %s30, 0
      %p288 = por %p286, %p287
      %s290 = sadd.s32 %s289, 1
      %p293 = scmp.eq.s32.totalorder %s24, 1
      %p294 = scmp.ne.s32.totalorder %s289, %s291
      %p295 = scmp.eq.s32.totalorder %s24, 0
      %p296 = por %p294, %p295
      %p297 = scmp.ne.s32.totalorder %s289, %s291
      %p298 = scmp.eq.s32.totalorder %s29, 1
      %p299 = por %p297, %p298
      %p300 = scmp.ne.s32.totalorder %s291, %s292
      %p301 = scmp.eq.s32.totalorder %s29, 0
      %p302 = por %p300, %p301
      %p303 = scmp.ne.s32.totalorder %s291, %s292
      %p304 = scmp.eq.s32.totalorder %s30, 1
      %p305 = por %p303, %p304
      %p307 = scmp.ne.s32.totalorder %s292, %s306
      %p308 = scmp.eq.s32.totalorder %s30, 0
      %p309 = por %p307, %p308
      %s310 = ssub.s32 %s24, %s31
      %p311 = scmp.eq.s32.totalorder %s310, 0
      %s313 = sadd.s32 %s312, 1
      %s314 = scalar_select %p311, %s312, %s313
      %p317 = pneg %p311
      %p318 = scmp.eq.s32.totalorder %s24, 1
      %p319 = por %p317, %p318
      %p320 = scmp.ne.s32.totalorder %s312, %s315
      %p321 = scmp.eq.s32.totalorder %s24, 0
      %p322 = por %p320, %p321
      %p323 = scmp.ne.s32.totalorder %s312, %s315
      %p324 = scmp.eq.s32.totalorder %s29, 1
      %p325 = por %p323, %p324
      %p326 = scmp.ne.s32.totalorder %s315, %s316
      %p327 = scmp.eq.s32.totalorder %s29, 0
      %p328 = por %p326, %p327
      %p329 = scmp.ne.s32.totalorder %s315, %s316
      %p330 = scmp.eq.s32.totalorder %s30, 1
      %p331 = por %p329, %p330
      %p333 = scmp.ne.s32.totalorder %s316, %s332
      %p334 = scmp.eq.s32.totalorder %s30, 0
      %p335 = por %p333, %p334
      %p336 = scmp.le.s32.totalorder 1, %s24
      %p337 = scmp.lt.s32.totalorder %s24, 3
      %p338 = pnand %p336, %p337
      %p339 = pneg %p338
      // Predicated region
      $region9: #{neural_network_forward.1} parent=5 // pred_check
        _
      $region10: #{neural_network_forward.1} parent=5 // pred_check_branch
        %341 = sbr.rel (%p338) target = $region12
      $region11: #{neural_network_forward.1} parent=5 // pred_region
        %s342 = ssub.s32 %s24, 1
        // Predicated region
        $region13: #{neural_network_forward.1} parent=11 // pred_check
          %p343 = pneg %p71
        $region14: #{neural_network_forward.1} parent=11 // pred_check_branch
          %345 = sbr.rel (%p343) target = $region16
        $region15: #{neural_network_forward.1} parent=11 // pred_region
          _
        $region16: #{neural_network_forward.1} parent=11 // pred_fallthru
          _
        // Predicated region
        $region17: #{neural_network_forward.1} parent=11 // pred_check
          %p346 = pneg %p92
        $region18: #{neural_network_forward.1} parent=11 // pred_check_branch
          %348 = sbr.rel (%p346) target = $region20
        $region19: #{neural_network_forward.1} parent=11 // pred_region
          _
        $region20: #{neural_network_forward.1} parent=11 // pred_fallthru
          _
        // Predicated region
        $region21: #{neural_network_forward.1} parent=11 // pred_check
          %p349 = pneg %p113
        $region22: #{neural_network_forward.1} parent=11 // pred_check_branch
          %351 = sbr.rel (%p349) target = $region24
        $region23: #{neural_network_forward.1} parent=11 // pred_region
          _
        $region24: #{neural_network_forward.1} parent=11 // pred_fallthru
          _
        // Predicated region
        $region25: #{neural_network_forward.1} parent=11 // pred_check
          %p352 = pneg %p134
        $region26: #{neural_network_forward.1} parent=11 // pred_check_branch
          %354 = sbr.rel (%p352) target = $region28
        $region27: #{neural_network_forward.1} parent=11 // pred_region
          _
        $region28: #{neural_network_forward.1} parent=11 // pred_fallthru
          _
        // Predicated region
        $region29: #{neural_network_forward.1} parent=11 // pred_check
          %p355 = pneg %p155
        $region30: #{neural_network_forward.1} parent=11 // pred_check_branch
          %357 = sbr.rel (%p355) target = $region32
        $region31: #{neural_network_forward.1} parent=11 // pred_region
          _
        $region32: #{neural_network_forward.1} parent=11 // pred_fallthru
          _
        // Predicated region
        $region33: #{neural_network_forward.1} parent=11 // pred_check
          %p358 = pneg %p176
        $region34: #{neural_network_forward.1} parent=11 // pred_check_branch
          %360 = sbr.rel (%p358) target = $region36
        $region35: #{neural_network_forward.1} parent=11 // pred_region
          _
        $region36: #{neural_network_forward.1} parent=11 // pred_fallthru
          _
        // Predicated region
        $region37: #{neural_network_forward.1} parent=11 // pred_check
          %p361 = pneg %p197
        $region38: #{neural_network_forward.1} parent=11 // pred_check_branch
          %363 = sbr.rel (%p361) target = $region40
        $region39: #{neural_network_forward.1} parent=11 // pred_region
          _
        $region40: #{neural_network_forward.1} parent=11 // pred_fallthru
          _
        // Predicated region
        $region41: #{neural_network_forward.1} parent=11 // pred_check
          %p364 = pneg %p218
        $region42: #{neural_network_forward.1} parent=11 // pred_check_branch
          %366 = sbr.rel (%p364) target = $region44
        $region43: #{neural_network_forward.1} parent=11 // pred_region
          _
        $region44: #{neural_network_forward.1} parent=11 // pred_fallthru
          _
        // Predicated region
        $region45: #{neural_network_forward.1} parent=11 // pred_check
          %p367 = pneg %p239
        $region46: #{neural_network_forward.1} parent=11 // pred_check_branch
          %369 = sbr.rel (%p367) target = $region48
        $region47: #{neural_network_forward.1} parent=11 // pred_region
          _
        $region48: #{neural_network_forward.1} parent=11 // pred_fallthru
          _
        // Predicated region
        $region49: #{neural_network_forward.1} parent=11 // pred_check
          %p370 = pneg %p260
        $region50: #{neural_network_forward.1} parent=11 // pred_check_branch
          %372 = sbr.rel (%p370) target = $region52
        $region51: #{neural_network_forward.1} parent=11 // pred_region
          _
        $region52: #{neural_network_forward.1} parent=11 // pred_fallthru
          _
        // Predicated region
        $region53: #{neural_network_forward.1} parent=11 // pred_check
          %p373 = pneg %p281
        $region54: #{neural_network_forward.1} parent=11 // pred_check_branch
          %375 = sbr.rel (%p373) target = $region56
        $region55: #{neural_network_forward.1} parent=11 // pred_region
          _
        $region56: #{neural_network_forward.1} parent=11 // pred_fallthru
          _
        // Predicated region
        $region57: #{neural_network_forward.1} parent=11 // pred_check
          %p376 = pneg %p302
        $region58: #{neural_network_forward.1} parent=11 // pred_check_branch
          %378 = sbr.rel (%p376) target = $region60
        $region59: #{neural_network_forward.1} parent=11 // pred_region
          _
        $region60: #{neural_network_forward.1} parent=11 // pred_fallthru
          _
      $region12: #{neural_network_forward.1} parent=5 // pred_fallthru
        _
      %p379 = scmp.lt.s32.totalorder %s24, 2
      // Predicated region
      $region61: #{neural_network_forward.1} parent=5 // pred_check
        %p380 = pneg %p379
      $region62: #{neural_network_forward.1} parent=5 // pred_check_branch
        %382 = sbr.rel (%p380) target = $region64
      $region63: #{neural_network_forward.1} parent=5 // pred_region
        // Predicated region
        $region65: #{neural_network_forward.1} parent=63 // pred_check
          %p383 = pneg %p44
        $region66: #{neural_network_forward.1} parent=63 // pred_check_branch
          %385 = sbr.rel (%p383) target = $region68
        $region67: #{neural_network_forward.1} parent=63 // pred_region
          %p386 = scmp.lt.s32.totalorder %s24, 1
          %s387 = scalar_select %p386, %s24, 1
          %s388 = smul.addr %s387, 8
          %s389 = scalar_lea.vmem %s0, %s388
        $region68: #{neural_network_forward.1} parent=63 // pred_fallthru
          _
      $region64: #{neural_network_forward.1} parent=5 // pred_fallthru
        _
      %p390 = scmp.le.s32.totalorder 1, %s24
      %p391 = scmp.lt.s32.totalorder %s24, 3
      %p392 = pnand %p390, %p391
      %p393 = pneg %p392
      // Predicated region
      $region69: #{neural_network_forward.1} parent=5 // pred_check
        _
      $region70: #{neural_network_forward.1} parent=5 // pred_check_branch
        %395 = sbr.rel (%p392) target = $region72
      $region71: #{neural_network_forward.1} parent=5 // pred_region
        %s396 = ssub.s32 %s24, 1
        %p397 = scmp.lt.s32.totalorder %s29, 1
        %s398 = scalar_select %p397, %s29, 1
        %s399 = smul.addr %s398, 8
        %s400 = scalar_lea.vmem %s0, %s399
        %p401 = pneg %p50
        %p402 = pneg %p47
        %p403 = pneg %p71
        %p404 = pneg %p68
        %p405 = pneg %p92
        %p406 = pneg %p89
        %p407 = pneg %p113
        %p408 = pneg %p110
        %p409 = pneg %p134
        %p410 = pneg %p131
        %p411 = pneg %p155
        %p412 = pneg %p152
        %p413 = pneg %p176
        %p414 = pneg %p173
        %p415 = pneg %p197
        %p416 = pneg %p194
        %p417 = pneg %p218
        %p418 = pneg %p215
        %p419 = pneg %p239
        %p420 = pneg %p236
        %p421 = pneg %p260
        %p422 = pneg %p257
        %p423 = pneg %p281
        %p424 = pneg %p278
        %p425 = pneg %p302
        %p426 = pneg %p299
        %p427 = pneg %p328
        %p428 = pneg %p325
        %s429 = sand.u32 %s315, 1
        %s430 = scalar_lea.sflag [#allocation4], %s429
        %s431 = sand.u32 %s315, 1
        %s432 = scalar_lea.vmem [#allocation3], %s431
        %p433 = scmp.lt.s32.totalorder %s29, 1
        %s434 = scalar_select %p433, %s29, 1
        %s435 = smul.addr %s434, 8
        %s436 = scalar_lea.vmem %s0, %s435
        %v437 = vld [vmem:[%s436] sm:$0xff]
        %v438 = vld [vmem:[%s1] sm:$0xff]
        %v439 = vld [vmem:[%s1 + $0x8] sm:$0xff]
        %v440 = vld [vmem:[%s2] sm:$0xff]
        %v441 = vld [vmem:[%s2 + $0x8] sm:$0xff]
        %443 = vrot.lane.b32.xlu0 %v437, 127
        %v444 = vpop.permute.xlu0 %443
        %446 = vrot.lane.b32.xlu0 %v437, 1
        %v447 = vpop.permute.xlu0 %446
        %449 = vrot.lane.b32.xlu0 %v437, 3
        %v450 = vpop.permute.xlu0 %449
        %vm452 = vcmask 7168
        %v453 = vsel %vm452, %v444, %v447
        %vm454 = vcmask 138240
        %v455 = vsel %vm454, %v453, %v450
        %457 = vrot.lane.b32.xlu0 %v455, 127
        %v458 = vpop.permute.xlu0 %457
        %460 = vrot.lane.b32.xlu0 %v455, 126
        %v461 = vpop.permute.xlu0 %460
        %464 = vset.pattern.permute.xlu0 0
        %465 = vperm.xlu0 %464, %v440
        %v466 = vpop.permute.xlu0 %465
        %469 = vset.pattern.permute.xlu0 0
        %470 = vperm.xlu0 %469, %v441
        %v471 = vpop.permute.xlu0 %470
        %vm473 = vcmask 195584
        %v475 = vsel %vm473, %v438, 0
        %v478 = vsel %vm473, %v439, 0
        %480 = vmatpush.msra.mxu0 0.0
        %481 = vmatpush.msra.mxu0 0.0
        %482 = vmatpush.msra.mxu0 0.0
        %483 = vmatpush.msra.mxu0 0.0
        %484 = vmatpush.msra.mxu0 0.0
        %485 = vmatpush.msra.mxu0 0.0
        %486 = vmatpush.msra.mxu0 0.0
        %487 = vmatpush.msra.mxu0 0.0
        %488 = vmatpush.msra.mxu0 0.0
        %489 = vmatpush.msra.mxu0 0.0
        %490 = vmatpush.msra.mxu0 0.0
        %491 = vmatpush.msra.mxu0 0.0
        %492 = vmatpush.msra.mxu0 0.0
        %493 = vmatpush.msra.mxu0 %v461
        %494 = vmatpush.msra.mxu0 %v458
        %495 = vmatpush.msra.mxu0 %v455
        %496 = vmatmul.f32.gmra.mxu0 %v475
        %v497 = vpop.f32.mrf.mxu0
        %v498 = vadd.f32 %v466, %v497
        %499 = vmatmul.f32.gmra.mxu0 %v478
        %v500 = vpop.f32.mrf.mxu0
        %v501 = vadd.f32 %v471, %v500
        %502 = vdwg.mxu0
        %v503 = vmax.f32 %v498, 0.0
        %v504 = vmax.f32 %v501, 0.0
        %v505 = vld [vmem:[%s3] sm:$0xff]
        %v506 = vld [vmem:[%s3 + $0x8] sm:$0xff]
        %v507 = vld [vmem:[%s3 + $0x10] sm:$0xff]
        %v508 = vld [vmem:[%s3 + $0x18] sm:$0xff]
        %v509 = vld [vmem:[%s4] sm:$0xff]
        %v510 = vld [vmem:[%s4 + $0x8] sm:$0xff]
        %v511 = vld [vmem:[%s4 + $0x10] sm:$0xff]
        %v512 = vld [vmem:[%s4 + $0x18] sm:$0xff]
        %515 = vrot.lane.b32.xlu0 %v503, 126
        %v516 = vpop.permute.xlu0 %515
        %517 = vrot.lane.b32.xlu0 %v504, 126
        %v518 = vpop.permute.xlu0 %517
        %521 = vrot.lane.b32.xlu0 %v503, 2
        %v522 = vpop.permute.xlu0 %521
        %523 = vrot.lane.b32.xlu0 %v504, 2
        %v524 = vpop.permute.xlu0 %523
        %527 = vrot.lane.b32.xlu0 %v503, 4
        %v528 = vpop.permute.xlu0 %527
        %529 = vrot.lane.b32.xlu0 %v504, 4
        %v530 = vpop.permute.xlu0 %529
        %533 = vrot.lane.b32.xlu0 %v503, 6
        %v534 = vpop.permute.xlu0 %533
        %535 = vrot.lane.b32.xlu0 %v504, 6
        %v536 = vpop.permute.xlu0 %535
        %v539 = vsel %vm452, %v516, %v503
        %v540 = vsel %vm452, %v518, %v504
        %vm541 = vcmask 15360
        %v542 = vsel %vm541, %v539, %v522
        %v543 = vsel %vm541, %v540, %v524
        %vm544 = vcmask 146432
        %v545 = vsel %vm544, %v542, %v528
        %v546 = vsel %vm544, %v543, %v530
        %vm547 = vcmask 154624
        %v548 = vsel %vm547, %v545, %v534
        %v549 = vsel %vm547, %v546, %v536
        %552 = vrot.lane.b32.xlu0 %v548, 127
        %v553 = vpop.permute.xlu0 %552
        %554 = vrot.lane.b32.xlu0 %v549, 127
        %v555 = vpop.permute.xlu0 %554
        %558 = vrot.lane.b32.xlu0 %v548, 126
        %v559 = vpop.permute.xlu0 %558
        %560 = vrot.lane.b32.xlu0 %v549, 126
        %v561 = vpop.permute.xlu0 %560
        %564 = vrot.lane.b32.xlu0 %v548, 125
        %v565 = vpop.permute.xlu0 %564
        %566 = vrot.lane.b32.xlu0 %v549, 125
        %v567 = vpop.permute.xlu0 %566
        %570 = vrot.lane.b32.xlu0 %v548, 124
        %v571 = vpop.permute.xlu0 %570
        %572 = vrot.lane.b32.xlu0 %v549, 124
        %v573 = vpop.permute.xlu0 %572
        %577 = vset.pattern.permute.xlu0 0
        %578 = vperm.xlu0 %577, %v509
        %v579 = vpop.permute.xlu0 %578
        %582 = vset.pattern.permute.xlu0 0
        %583 = vperm.xlu0 %582, %v510
        %v584 = vpop.permute.xlu0 %583
        %587 = vset.pattern.permute.xlu0 0
        %588 = vperm.xlu0 %587, %v511
        %v589 = vpop.permute.xlu0 %588
        %592 = vset.pattern.permute.xlu0 0
        %593 = vperm.xlu0 %592, %v512
        %v594 = vpop.permute.xlu0 %593
        %vm596 = vcmask 654336
        %v598 = vsel %vm596, %v505, 0
        %v601 = vsel %vm596, %v506, 0
        %v604 = vsel %vm596, %v507, 0
        %v607 = vsel %vm596, %v508, 0
        %609 = vmatpush.msra.mxu0 0.0
        %610 = vmatpush.msra.mxu0 0.0
        %611 = vmatpush.msra.mxu0 0.0
        %612 = vmatpush.msra.mxu0 0.0
        %613 = vmatpush.msra.mxu0 0.0
        %614 = vmatpush.msra.mxu0 0.0
        %615 = vmatpush.msra.mxu0 %v573
        %616 = vmatpush.msra.mxu0 %v571
        %617 = vmatpush.msra.mxu0 %v567
        %618 = vmatpush.msra.mxu0 %v565
        %619 = vmatpush.msra.mxu0 %v561
        %620 = vmatpush.msra.mxu0 %v559
        %621 = vmatpush.msra.mxu0 %v555
        %622 = vmatpush.msra.mxu0 %v553
        %623 = vmatpush.msra.mxu0 %v549
        %624 = vmatpush.msra.mxu0 %v548
        %625 = vmatmul.f32.gmra.mxu0 %v598
        %v626 = vpop.f32.mrf.mxu0
        %v627 = vadd.f32 %v579, %v626
        %628 = vmatmul.f32.gmra.mxu0 %v601
        %v629 = vpop.f32.mrf.mxu0
        %v630 = vadd.f32 %v584, %v629
        %631 = vmatmul.f32.gmra.mxu0 %v604
        %v632 = vpop.f32.mrf.mxu0
        %v633 = vadd.f32 %v589, %v632
        %634 = vmatmul.f32.gmra.mxu0 %v607
        %v635 = vpop.f32.mrf.mxu0
        %v636 = vadd.f32 %v594, %v635
        %637 = vdwg.mxu0
        %v638 = vmax.f32 %v627, 0.0
        %v639 = vmax.f32 %v630, 0.0
        %v640 = vmax.f32 %v633, 0.0
        %v641 = vmax.f32 %v636, 0.0
        %v642 = vld [vmem:[%s5] sm:$0xff]
        %v643 = vld [vmem:[%s5 + $0x8] sm:$0xff]
        %v644 = vld [vmem:[%s5 + $0x10] sm:$0xff]
        %v645 = vld [vmem:[%s5 + $0x18] sm:$0xff]
        %v646 = vld [vmem:[%s5 + $0x20] sm:$0xff]
        %v647 = vld [vmem:[%s5 + $0x28] sm:$0xff]
        %v648 = vld [vmem:[%s5 + $0x30] sm:$0xff]
        %v649 = vld [vmem:[%s5 + $0x38] sm:$0xff]
        %v650 = vld [vmem:[%s5 + $0x40] sm:$0xff]
        %v651 = vld [vmem:[%s5 + $0x48] sm:$0xff]
        %v652 = vld [vmem:[%s5 + $0x50] sm:$0xff]
        %v653 = vld [vmem:[%s5 + $0x58] sm:$0xff]
        %v654 = vld [vmem:[%s5 + $0x60] sm:$0xff]
        %v655 = vld [vmem:[%s5 + $0x68] sm:$0xff]
        %v656 = vld [vmem:[%s5 + $0x70] sm:$0xff]
        %v657 = vld [vmem:[%s5 + $0x78] sm:$0xff]
        %v658 = vld [vmem:[%s6] sm:$0xff]
        %v659 = vld [vmem:[%s6 + $0x8] sm:$0xff]
        %v660 = vld [vmem:[%s6 + $0x10] sm:$0xff]
        %v661 = vld [vmem:[%s6 + $0x18] sm:$0xff]
        %v662 = vld [vmem:[%s6 + $0x20] sm:$0xff]
        %v663 = vld [vmem:[%s6 + $0x28] sm:$0xff]
        %v664 = vld [vmem:[%s6 + $0x30] sm:$0xff]
        %v665 = vld [vmem:[%s6 + $0x38] sm:$0xff]
        %670 = vrot.lane.b32.xlu0 %v638, 126
        %v671 = vpop.permute.xlu0 %670
        %672 = vrot.lane.b32.xlu0 %v639, 126
        %v673 = vpop.permute.xlu0 %672
        %674 = vrot.lane.b32.xlu0 %v640, 126
        %v675 = vpop.permute.xlu0 %674
        %676 = vrot.lane.b32.xlu0 %v641, 126
        %v677 = vpop.permute.xlu0 %676
        %682 = vrot.lane.b32.xlu0 %v638, 2
        %v683 = vpop.permute.xlu0 %682
        %684 = vrot.lane.b32.xlu0 %v639, 2
        %v685 = vpop.permute.xlu0 %684
        %686 = vrot.lane.b32.xlu0 %v640, 2
        %v687 = vpop.permute.xlu0 %686
        %688 = vrot.lane.b32.xlu0 %v641, 2
        %v689 = vpop.permute.xlu0 %688
        %694 = vrot.lane.b32.xlu0 %v638, 4
        %v695 = vpop.permute.xlu0 %694
        %696 = vrot.lane.b32.xlu0 %v639, 4
        %v697 = vpop.permute.xlu0 %696
        %698 = vrot.lane.b32.xlu0 %v640, 4
        %v699 = vpop.permute.xlu0 %698
        %700 = vrot.lane.b32.xlu0 %v641, 4
        %v701 = vpop.permute.xlu0 %700
        %706 = vrot.lane.b32.xlu0 %v638, 6
        %v707 = vpop.permute.xlu0 %706
        %708 = vrot.lane.b32.xlu0 %v639, 6
        %v709 = vpop.permute.xlu0 %708
        %710 = vrot.lane.b32.xlu0 %v640, 6
        %v711 = vpop.permute.xlu0 %710
        %712 = vrot.lane.b32.xlu0 %v641, 6
        %v713 = vpop.permute.xlu0 %712
        %v718 = vsel %vm452, %v671, %v638
        %v719 = vsel %vm452, %v673, %v639
        %v720 = vsel %vm452, %v675, %v640
        %v721 = vsel %vm452, %v677, %v641
        %v722 = vsel %vm541, %v718, %v683
        %v723 = vsel %vm541, %v719, %v685
        %v724 = vsel %vm541, %v720, %v687
        %v725 = vsel %vm541, %v721, %v689
        %v726 = vsel %vm544, %v722, %v695
        %v727 = vsel %vm544, %v723, %v697
        %v728 = vsel %vm544, %v724, %v699
        %v729 = vsel %vm544, %v725, %v701
        %v730 = vsel %vm547, %v726, %v707
        %v731 = vsel %vm547, %v727, %v709
        %v732 = vsel %vm547, %v728, %v711
        %v733 = vsel %vm547, %v729, %v713
        %738 = vrot.lane.b32.xlu0 %v730, 127
        %v739 = vpop.permute.xlu0 %738
        %740 = vrot.lane.b32.xlu0 %v731, 127
        %v741 = vpop.permute.xlu0 %740
        %742 = vrot.lane.b32.xlu0 %v732, 127
        %v743 = vpop.permute.xlu0 %742
        %744 = vrot.lane.b32.xlu0 %v733, 127
        %v745 = vpop.permute.xlu0 %744
        %750 = vrot.lane.b32.xlu0 %v730, 126
        %v751 = vpop.permute.xlu0 %750
        %752 = vrot.lane.b32.xlu0 %v731, 126
        %v753 = vpop.permute.xlu0 %752
        %754 = vrot.lane.b32.xlu0 %v732, 126
        %v755 = vpop.permute.xlu0 %754
        %756 = vrot.lane.b32.xlu0 %v733, 126
        %v757 = vpop.permute.xlu0 %756
        %762 = vrot.lane.b32.xlu0 %v730, 125
        %v763 = vpop.permute.xlu0 %762
        %764 = vrot.lane.b32.xlu0 %v731, 125
        %v765 = vpop.permute.xlu0 %764
        %766 = vrot.lane.b32.xlu0 %v732, 125
        %v767 = vpop.permute.xlu0 %766
        %768 = vrot.lane.b32.xlu0 %v733, 125
        %v769 = vpop.permute.xlu0 %768
        %774 = vrot.lane.b32.xlu0 %v730, 124
        %v775 = vpop.permute.xlu0 %774
        %776 = vrot.lane.b32.xlu0 %v731, 124
        %v777 = vpop.permute.xlu0 %776
        %778 = vrot.lane.b32.xlu0 %v732, 124
        %v779 = vpop.permute.xlu0 %778
        %780 = vrot.lane.b32.xlu0 %v733, 124
        %v781 = vpop.permute.xlu0 %780
        %787 = vset.pattern.permute.xlu0 0
        %788 = vperm.xlu0 %787, %v658
        %v789 = vpop.permute.xlu0 %788
        %792 = vset.pattern.permute.xlu0 0
        %793 = vperm.xlu0 %792, %v659
        %v794 = vpop.permute.xlu0 %793
        %797 = vset.pattern.permute.xlu0 0
        %798 = vperm.xlu0 %797, %v660
        %v799 = vpop.permute.xlu0 %798
        %802 = vset.pattern.permute.xlu0 0
        %803 = vperm.xlu0 %802, %v661
        %v804 = vpop.permute.xlu0 %803
        %807 = vset.pattern.permute.xlu0 0
        %808 = vperm.xlu0 %807, %v662
        %v809 = vpop.permute.xlu0 %808
        %812 = vset.pattern.permute.xlu0 0
        %813 = vperm.xlu0 %812, %v663
        %v814 = vpop.permute.xlu0 %813
        %817 = vset.pattern.permute.xlu0 0
        %818 = vperm.xlu0 %817, %v664
        %v819 = vpop.permute.xlu0 %818
        %822 = vset.pattern.permute.xlu0 0
        %823 = vperm.xlu0 %822, %v665
        %v824 = vpop.permute.xlu0 %823
        %vm826 = vcmask 261120
        %v828 = vsel %vm826, %v643, 0
        %v831 = vsel %vm826, %v645, 0
        %v834 = vsel %vm826, %v647, 0
        %v837 = vsel %vm826, %v649, 0
        %v840 = vsel %vm826, %v651, 0
        %v843 = vsel %vm826, %v653, 0
        %v846 = vsel %vm826, %v655, 0
        %v849 = vsel %vm826, %v657, 0
        %851 = vmatpush.msra.mxu0 %v769
        %852 = vmatpush.msra.mxu0 %v767
        %853 = vmatpush.msra.mxu0 %v765
        %854 = vmatpush.msra.mxu0 %v763
        %855 = vmatpush.msra.mxu0 %v757
        %856 = vmatpush.msra.mxu0 %v755
        %857 = vmatpush.msra.mxu0 %v753
        %858 = vmatpush.msra.mxu0 %v751
        %859 = vmatpush.msra.mxu0 %v745
        %860 = vmatpush.msra.mxu0 %v743
        %861 = vmatpush.msra.mxu0 %v741
        %862 = vmatpush.msra.mxu0 %v739
        %863 = vmatpush.msra.mxu0 %v733
        %864 = vmatpush.msra.mxu0 %v732
        %865 = vmatpush.msra.mxu0 %v731
        %866 = vmatpush.msra.mxu0 %v730
        %867 = vmatmul.f32.gmra.mxu0 %v642
        %v868 = vpop.f32.mrf.mxu0
        %v869 = vadd.f32 %v789, %v868
        %870 = vmatmul.f32.gmra.mxu0 %v644
        %v871 = vpop.f32.mrf.mxu0
        %v872 = vadd.f32 %v794, %v871
        %873 = vmatmul.f32.gmra.mxu0 %v646
        %v874 = vpop.f32.mrf.mxu0
        %v875 = vadd.f32 %v799, %v874
        %876 = vmatmul.f32.gmra.mxu0 %v648
        %v877 = vpop.f32.mrf.mxu0
        %v878 = vadd.f32 %v804, %v877
        %879 = vmatmul.f32.gmra.mxu0 %v650
        %v880 = vpop.f32.mrf.mxu0
        %v881 = vadd.f32 %v809, %v880
        %882 = vmatmul.f32.gmra.mxu0 %v652
        %v883 = vpop.f32.mrf.mxu0
        %v884 = vadd.f32 %v814, %v883
        %885 = vmatmul.f32.gmra.mxu0 %v654
        %v886 = vpop.f32.mrf.mxu0
        %v887 = vadd.f32 %v819, %v886
        %888 = vmatmul.f32.gmra.mxu0 %v656
        %v889 = vpop.f32.mrf.mxu0
        %v890 = vadd.f32 %v824, %v889
        %891 = vdwg.mxu0
        %892 = vmatpush.msra.mxu0 0.0
        %893 = vmatpush.msra.mxu0 0.0
        %894 = vmatpush.msra.mxu0 0.0
        %895 = vmatpush.msra.mxu0 0.0
        %896 = vmatpush.msra.mxu0 0.0
        %897 = vmatpush.msra.mxu0 0.0
        %898 = vmatpush.msra.mxu0 0.0
        %899 = vmatpush.msra.mxu0 0.0
        %900 = vmatpush.msra.mxu0 0.0
        %901 = vmatpush.msra.mxu0 0.0
        %902 = vmatpush.msra.mxu0 0.0
        %903 = vmatpush.msra.mxu0 0.0
        %904 = vmatpush.msra.mxu0 %v781
        %905 = vmatpush.msra.mxu0 %v779
        %906 = vmatpush.msra.mxu0 %v777
        %907 = vmatpush.msra.mxu0 %v775
        %908 = vmatmul.f32.gmra.mxu0 %v828
        %v909 = vpop.f32.mrf.mxu0
        %v910 = vadd.f32 %v869, %v909
        %911 = vmatmul.f32.gmra.mxu0 %v831
        %v912 = vpop.f32.mrf.mxu0
        %v913 = vadd.f32 %v872, %v912
        %914 = vmatmul.f32.gmra.mxu0 %v834
        %v915 = vpop.f32.mrf.mxu0
        %v916 = vadd.f32 %v875, %v915
        %917 = vmatmul.f32.gmra.mxu0 %v837
        %v918 = vpop.f32.mrf.mxu0
        %v919 = vadd.f32 %v878, %v918
        %920 = vmatmul.f32.gmra.mxu0 %v840
        %v921 = vpop.f32.mrf.mxu0
        %v922 = vadd.f32 %v881, %v921
        %923 = vmatmul.f32.gmra.mxu0 %v843
        %v924 = vpop.f32.mrf.mxu0
        %v925 = vadd.f32 %v884, %v924
        %926 = vmatmul.f32.gmra.mxu0 %v846
        %v927 = vpop.f32.mrf.mxu0
        %v928 = vadd.f32 %v887, %v927
        %929 = vmatmul.f32.gmra.mxu0 %v849
        %v930 = vpop.f32.mrf.mxu0
        %v931 = vadd.f32 %v890, %v930
        %932 = vdwg.mxu0
        %v933 = vmax.f32 %v910, 0.0
        %v934 = vmax.f32 %v913, 0.0
        %v935 = vmax.f32 %v916, 0.0
        %v936 = vmax.f32 %v919, 0.0
        %v937 = vmax.f32 %v922, 0.0
        %v938 = vmax.f32 %v925, 0.0
        %v939 = vmax.f32 %v928, 0.0
        %v940 = vmax.f32 %v931, 0.0
        %v941 = vld [vmem:[%s7] sm:$0xff]
        %v942 = vld [vmem:[%s7 + $0x8] sm:$0xff]
        %v943 = vld [vmem:[%s7 + $0x10] sm:$0xff]
        %v944 = vld [vmem:[%s7 + $0x18] sm:$0xff]
        %v945 = vld [vmem:[%s7 + $0x20] sm:$0xff]
        %v946 = vld [vmem:[%s7 + $0x28] sm:$0xff]
        %v947 = vld [vmem:[%s7 + $0x30] sm:$0xff]
        %v948 = vld [vmem:[%s7 + $0x38] sm:$0xff]
        %v949 = vld [vmem:[%s7 + $0x40] sm:$0xff]
        %v950 = vld [vmem:[%s7 + $0x48] sm:$0xff]
        %v951 = vld [vmem:[%s7 + $0x50] sm:$0xff]
        %v952 = vld [vmem:[%s7 + $0x58] sm:$0xff]
        %v953 = vld [vmem:[%s7 + $0x60] sm:$0xff]
        %v954 = vld [vmem:[%s7 + $0x68] sm:$0xff]
        %v955 = vld [vmem:[%s7 + $0x70] sm:$0xff]
        %v956 = vld [vmem:[%s7 + $0x78] sm:$0xff]
        %v957 = vld [vmem:[%s7 + $0x80] sm:$0xff]
        %v958 = vld [vmem:[%s7 + $0x88] sm:$0xff]
        %v959 = vld [vmem:[%s7 + $0x90] sm:$0xff]
        %v960 = vld [vmem:[%s7 + $0x98] sm:$0xff]
        %v961 = vld [vmem:[%s7 + $0xa0] sm:$0xff]
        %v962 = vld [vmem:[%s7 + $0xa8] sm:$0xff]
        %v963 = vld [vmem:[%s7 + $0xb0] sm:$0xff]
        %v964 = vld [vmem:[%s7 + $0xb8] sm:$0xff]
        %v965 = vld [vmem:[%s8] sm:$0xff]
        %v966 = vld [vmem:[%s8 + $0x8] sm:$0xff]
        %v967 = vld [vmem:[%s8 + $0x10] sm:$0xff]
        %v968 = vld [vmem:[%s8 + $0x18] sm:$0xff]
        %v969 = vld [vmem:[%s8 + $0x20] sm:$0xff]
        %v970 = vld [vmem:[%s8 + $0x28] sm:$0xff]
        %v971 = vld [vmem:[%s8 + $0x30] sm:$0xff]
        %v972 = vld [vmem:[%s8 + $0x38] sm:$0xff]
        %981 = vrot.lane.b32.xlu0 %v933, 126
        %v982 = vpop.permute.xlu0 %981
        %983 = vrot.lane.b32.xlu0 %v934, 126
        %v984 = vpop.permute.xlu0 %983
        %985 = vrot.lane.b32.xlu0 %v935, 126
        %v986 = vpop.permute.xlu0 %985
        %987 = vrot.lane.b32.xlu0 %v936, 126
        %v988 = vpop.permute.xlu0 %987
        %989 = vrot.lane.b32.xlu0 %v937, 126
        %v990 = vpop.permute.xlu0 %989
        %991 = vrot.lane.b32.xlu0 %v938, 126
        %v992 = vpop.permute.xlu0 %991
        %993 = vrot.lane.b32.xlu0 %v939, 126
        %v994 = vpop.permute.xlu0 %993
        %995 = vrot.lane.b32.xlu0 %v940, 126
        %v996 = vpop.permute.xlu0 %995
        %1005 = vrot.lane.b32.xlu0 %v933, 2
        %v1006 = vpop.permute.xlu0 %1005
        %1007 = vrot.lane.b32.xlu0 %v934, 2
        %v1008 = vpop.permute.xlu0 %1007
        %1009 = vrot.lane.b32.xlu0 %v935, 2
        %v1010 = vpop.permute.xlu0 %1009
        %1011 = vrot.lane.b32.xlu0 %v936, 2
        %v1012 = vpop.permute.xlu0 %1011
        %1013 = vrot.lane.b32.xlu0 %v937, 2
        %v1014 = vpop.permute.xlu0 %1013
        %1015 = vrot.lane.b32.xlu0 %v938, 2
        %v1016 = vpop.permute.xlu0 %1015
        %1017 = vrot.lane.b32.xlu0 %v939, 2
        %v1018 = vpop.permute.xlu0 %1017
        %1019 = vrot.lane.b32.xlu0 %v940, 2
        %v1020 = vpop.permute.xlu0 %1019
        %1029 = vrot.lane.b32.xlu0 %v933, 4
        %v1030 = vpop.permute.xlu0 %1029
        %1031 = vrot.lane.b32.xlu0 %v934, 4
        %v1032 = vpop.permute.xlu0 %1031
        %1033 = vrot.lane.b32.xlu0 %v935, 4
        %v1034 = vpop.permute.xlu0 %1033
        %1035 = vrot.lane.b32.xlu0 %v936, 4
        %v1036 = vpop.permute.xlu0 %1035
        %1037 = vrot.lane.b32.xlu0 %v937, 4
        %v1038 = vpop.permute.xlu0 %1037
        %1039 = vrot.lane.b32.xlu0 %v938, 4
        %v1040 = vpop.permute.xlu0 %1039
        %1041 = vrot.lane.b32.xlu0 %v939, 4
        %v1042 = vpop.permute.xlu0 %1041
        %1043 = vrot.lane.b32.xlu0 %v940, 4
        %v1044 = vpop.permute.xlu0 %1043
        %1053 = vrot.lane.b32.xlu0 %v933, 6
        %v1054 = vpop.permute.xlu0 %1053
        %1055 = vrot.lane.b32.xlu0 %v934, 6
        %v1056 = vpop.permute.xlu0 %1055
        %1057 = vrot.lane.b32.xlu0 %v935, 6
        %v1058 = vpop.permute.xlu0 %1057
        %1059 = vrot.lane.b32.xlu0 %v936, 6
        %v1060 = vpop.permute.xlu0 %1059
        %1061 = vrot.lane.b32.xlu0 %v937, 6
        %v1062 = vpop.permute.xlu0 %1061
        %1063 = vrot.lane.b32.xlu0 %v938, 6
        %v1064 = vpop.permute.xlu0 %1063
        %1065 = vrot.lane.b32.xlu0 %v939, 6
        %v1066 = vpop.permute.xlu0 %1065
        %1067 = vrot.lane.b32.xlu0 %v940, 6
        %v1068 = vpop.permute.xlu0 %1067
        %v1077 = vsel %vm452, %v982, %v933
        %v1078 = vsel %vm452, %v984, %v934
        %v1079 = vsel %vm452, %v986, %v935
        %v1080 = vsel %vm452, %v988, %v936
        %v1081 = vsel %vm452, %v990, %v937
        %v1082 = vsel %vm452, %v992, %v938
        %v1083 = vsel %vm452, %v994, %v939
        %v1084 = vsel %vm452, %v996, %v940
        %v1085 = vsel %vm541, %v1077, %v1006
        %v1086 = vsel %vm541, %v1078, %v1008
        %v1087 = vsel %vm541, %v1079, %v1010
        %v1088 = vsel %vm541, %v1080, %v1012
        %v1089 = vsel %vm541, %v1081, %v1014
        %v1090 = vsel %vm541, %v1082, %v1016
        %v1091 = vsel %vm541, %v1083, %v1018
        %v1092 = vsel %vm541, %v1084, %v1020
        %v1093 = vsel %vm544, %v1085, %v1030
        %v1094 = vsel %vm544, %v1086, %v1032
        %v1095 = vsel %vm544, %v1087, %v1034
        %v1096 = vsel %vm544, %v1088, %v1036
        %v1097 = vsel %vm544, %v1089, %v1038
        %v1098 = vsel %vm544, %v1090, %v1040
        %v1099 = vsel %vm544, %v1091, %v1042
        %v1100 = vsel %vm544, %v1092, %v1044
        %v1101 = vsel %vm547, %v1093, %v1054
        %v1102 = vsel %vm547, %v1094, %v1056
        %v1103 = vsel %vm547, %v1095, %v1058
        %v1104 = vsel %vm547, %v1096, %v1060
        %v1105 = vsel %vm547, %v1097, %v1062
        %v1106 = vsel %vm547, %v1098, %v1064
        %v1107 = vsel %vm547, %v1099, %v1066
        %v1108 = vsel %vm547, %v1100, %v1068
        %1117 = vrot.lane.b32.xlu0 %v1101, 127
        %v1118 = vpop.permute.xlu0 %1117
        %1119 = vrot.lane.b32.xlu0 %v1102, 127
        %v1120 = vpop.permute.xlu0 %1119
        %1121 = vrot.lane.b32.xlu0 %v1103, 127
        %v1122 = vpop.permute.xlu0 %1121
        %1123 = vrot.lane.b32.xlu0 %v1104, 127
        %v1124 = vpop.permute.xlu0 %1123
        %1125 = vrot.lane.b32.xlu0 %v1105, 127
        %v1126 = vpop.permute.xlu0 %1125
        %1127 = vrot.lane.b32.xlu0 %v1106, 127
        %v1128 = vpop.permute.xlu0 %1127
        %1129 = vrot.lane.b32.xlu0 %v1107, 127
        %v1130 = vpop.permute.xlu0 %1129
        %1131 = vrot.lane.b32.xlu0 %v1108, 127
        %v1132 = vpop.permute.xlu0 %1131
        %1141 = vrot.lane.b32.xlu0 %v1101, 126
        %v1142 = vpop.permute.xlu0 %1141
        %1143 = vrot.lane.b32.xlu0 %v1102, 126
        %v1144 = vpop.permute.xlu0 %1143
        %1145 = vrot.lane.b32.xlu0 %v1103, 126
        %v1146 = vpop.permute.xlu0 %1145
        %1147 = vrot.lane.b32.xlu0 %v1104, 126
        %v1148 = vpop.permute.xlu0 %1147
        %1149 = vrot.lane.b32.xlu0 %v1105, 126
        %v1150 = vpop.permute.xlu0 %1149
        %1151 = vrot.lane.b32.xlu0 %v1106, 126
        %v1152 = vpop.permute.xlu0 %1151
        %1153 = vrot.lane.b32.xlu0 %v1107, 126
        %v1154 = vpop.permute.xlu0 %1153
        %1155 = vrot.lane.b32.xlu0 %v1108, 126
        %v1156 = vpop.permute.xlu0 %1155
        %1165 = vrot.lane.b32.xlu0 %v1101, 125
        %v1166 = vpop.permute.xlu0 %1165
        %1167 = vrot.lane.b32.xlu0 %v1102, 125
        %v1168 = vpop.permute.xlu0 %1167
        %1169 = vrot.lane.b32.xlu0 %v1103, 125
        %v1170 = vpop.permute.xlu0 %1169
        %1171 = vrot.lane.b32.xlu0 %v1104, 125
        %v1172 = vpop.permute.xlu0 %1171
        %1173 = vrot.lane.b32.xlu0 %v1105, 125
        %v1174 = vpop.permute.xlu0 %1173
        %1175 = vrot.lane.b32.xlu0 %v1106, 125
        %v1176 = vpop.permute.xlu0 %1175
        %1177 = vrot.lane.b32.xlu0 %v1107, 125
        %v1178 = vpop.permute.xlu0 %1177
        %1179 = vrot.lane.b32.xlu0 %v1108, 125
        %v1180 = vpop.permute.xlu0 %1179
        %1189 = vrot.lane.b32.xlu0 %v1101, 124
        %v1190 = vpop.permute.xlu0 %1189
        %1191 = vrot.lane.b32.xlu0 %v1102, 124
        %v1192 = vpop.permute.xlu0 %1191
        %1193 = vrot.lane.b32.xlu0 %v1103, 124
        %v1194 = vpop.permute.xlu0 %1193
        %1195 = vrot.lane.b32.xlu0 %v1104, 124
        %v1196 = vpop.permute.xlu0 %1195
        %1197 = vrot.lane.b32.xlu0 %v1105, 124
        %v1198 = vpop.permute.xlu0 %1197
        %1199 = vrot.lane.b32.xlu0 %v1106, 124
        %v1200 = vpop.permute.xlu0 %1199
        %1201 = vrot.lane.b32.xlu0 %v1107, 124
        %v1202 = vpop.permute.xlu0 %1201
        %1203 = vrot.lane.b32.xlu0 %v1108, 124
        %v1204 = vpop.permute.xlu0 %1203
        %1214 = vset.pattern.permute.xlu0 0
        %1215 = vperm.xlu0 %1214, %v965
        %v1216 = vpop.permute.xlu0 %1215
        %1219 = vset.pattern.permute.xlu0 0
        %1220 = vperm.xlu0 %1219, %v966
        %v1221 = vpop.permute.xlu0 %1220
        %1224 = vset.pattern.permute.xlu0 0
        %1225 = vperm.xlu0 %1224, %v967
        %v1226 = vpop.permute.xlu0 %1225
        %1229 = vset.pattern.permute.xlu0 0
        %1230 = vperm.xlu0 %1229, %v968
        %v1231 = vpop.permute.xlu0 %1230
        %1234 = vset.pattern.permute.xlu0 0
        %1235 = vperm.xlu0 %1234, %v969
        %v1236 = vpop.permute.xlu0 %1235
        %1239 = vset.pattern.permute.xlu0 0
        %1240 = vperm.xlu0 %1239, %v970
        %v1241 = vpop.permute.xlu0 %1240
        %1244 = vset.pattern.permute.xlu0 0
        %1245 = vperm.xlu0 %1244, %v971
        %v1246 = vpop.permute.xlu0 %1245
        %1249 = vset.pattern.permute.xlu0 0
        %1250 = vperm.xlu0 %1249, %v972
        %v1251 = vpop.permute.xlu0 %1250
        %vm1253 = vcmask 523264
        %v1255 = vsel %vm1253, %v943, 0
        %v1258 = vsel %vm1253, %v946, 0
        %v1261 = vsel %vm1253, %v949, 0
        %v1264 = vsel %vm1253, %v952, 0
        %v1267 = vsel %vm1253, %v955, 0
        %v1270 = vsel %vm1253, %v958, 0
        %v1273 = vsel %vm1253, %v961, 0
        %v1276 = vsel %vm1253, %v964, 0
        %1278 = vmatpush.msra.mxu0 %v1132
        %1279 = vmatpush.msra.mxu0 %v1130
        %1280 = vmatpush.msra.mxu0 %v1128
        %1281 = vmatpush.msra.mxu0 %v1126
        %1282 = vmatpush.msra.mxu0 %v1124
        %1283 = vmatpush.msra.mxu0 %v1122
        %1284 = vmatpush.msra.mxu0 %v1120
        %1285 = vmatpush.msra.mxu0 %v1118
        %1286 = vmatpush.msra.mxu0 %v1108
        %1287 = vmatpush.msra.mxu0 %v1107
        %1288 = vmatpush.msra.mxu0 %v1106
        %1289 = vmatpush.msra.mxu0 %v1105
        %1290 = vmatpush.msra.mxu0 %v1104
        %1291 = vmatpush.msra.mxu0 %v1103
        %1292 = vmatpush.msra.mxu0 %v1102
        %1293 = vmatpush.msra.mxu0 %v1101
        %1294 = vmatmul.f32.gmra.mxu0 %v941
        %v1295 = vpop.f32.mrf.mxu0
        %v1296 = vadd.f32 %v1216, %v1295
        %1297 = vmatmul.f32.gmra.mxu0 %v944
        %v1298 = vpop.f32.mrf.mxu0
        %v1299 = vadd.f32 %v1221, %v1298
        %1300 = vmatmul.f32.gmra.mxu0 %v947
        %v1301 = vpop.f32.mrf.mxu0
        %v1302 = vadd.f32 %v1226, %v1301
        %1303 = vmatmul.f32.gmra.mxu0 %v950
        %v1304 = vpop.f32.mrf.mxu0
        %v1305 = vadd.f32 %v1231, %v1304
        %1306 = vmatmul.f32.gmra.mxu0 %v953
        %v1307 = vpop.f32.mrf.mxu0
        %v1308 = vadd.f32 %v1236, %v1307
        %1309 = vmatmul.f32.gmra.mxu0 %v956
        %v1310 = vpop.f32.mrf.mxu0
        %v1311 = vadd.f32 %v1241, %v1310
        %1312 = vmatmul.f32.gmra.mxu0 %v959
        %v1313 = vpop.f32.mrf.mxu0
        %v1314 = vadd.f32 %v1246, %v1313
        %1315 = vmatmul.f32.gmra.mxu0 %v962
        %v1316 = vpop.f32.mrf.mxu0
        %v1317 = vadd.f32 %v1251, %v1316
        %1318 = vdwg.mxu0
        %1319 = vmatpush.msra.mxu0 %v1180
        %1320 = vmatpush.msra.mxu0 %v1178
        %1321 = vmatpush.msra.mxu0 %v1176
        %1322 = vmatpush.msra.mxu0 %v1174
        %1323 = vmatpush.msra.mxu0 %v1172
        %1324 = vmatpush.msra.mxu0 %v1170
        %1325 = vmatpush.msra.mxu0 %v1168
        %1326 = vmatpush.msra.mxu0 %v1166
        %1327 = vmatpush.msra.mxu0 %v1156
        %1328 = vmatpush.msra.mxu0 %v1154
        %1329 = vmatpush.msra.mxu0 %v1152
        %1330 = vmatpush.msra.mxu0 %v1150
        %1331 = vmatpush.msra.mxu0 %v1148
        %1332 = vmatpush.msra.mxu0 %v1146
        %1333 = vmatpush.msra.mxu0 %v1144
        %1334 = vmatpush.msra.mxu0 %v1142
        %1335 = vmatmul.f32.gmra.mxu0 %v942
        %v1336 = vpop.f32.mrf.mxu0
        %v1337 = vadd.f32 %v1296, %v1336
        %1338 = vmatmul.f32.gmra.mxu0 %v945
        %v1339 = vpop.f32.mrf.mxu0
        %v1340 = vadd.f32 %v1299, %v1339
        %1341 = vmatmul.f32.gmra.mxu0 %v948
        %v1342 = vpop.f32.mrf.mxu0
        %v1343 = vadd.f32 %v1302, %v1342
        %1344 = vmatmul.f32.gmra.mxu0 %v951
        %v1345 = vpop.f32.mrf.mxu0
        %v1346 = vadd.f32 %v1305, %v1345
        %1347 = vmatmul.f32.gmra.mxu0 %v954
        %v1348 = vpop.f32.mrf.mxu0
        %v1349 = vadd.f32 %v1308, %v1348
        %1350 = vmatmul.f32.gmra.mxu0 %v957
        %v1351 = vpop.f32.mrf.mxu0
        %v1352 = vadd.f32 %v1311, %v1351
        %1353 = vmatmul.f32.gmra.mxu0 %v960
        %v1354 = vpop.f32.mrf.mxu0
        %v1355 = vadd.f32 %v1314, %v1354
        %1356 = vmatmul.f32.gmra.mxu0 %v963
        %v1357 = vpop.f32.mrf.mxu0
        %v1358 = vadd.f32 %v1317, %v1357
        %1359 = vdwg.mxu0
        %1360 = vmatpush.msra.mxu0 0.0
        %1361 = vmatpush.msra.mxu0 0.0
        %1362 = vmatpush.msra.mxu0 0.0
        %1363 = vmatpush.msra.mxu0 0.0
        %1364 = vmatpush.msra.mxu0 0.0
        %1365 = vmatpush.msra.mxu0 0.0
        %1366 = vmatpush.msra.mxu0 0.0
        %1367 = vmatpush.msra.mxu0 0.0
        %1368 = vmatpush.msra.mxu0 %v1204
        %1369 = vmatpush.msra.mxu0 %v1202
        %1370 = vmatpush.msra.mxu0 %v1200
        %1371 = vmatpush.msra.mxu0 %v1198
        %1372 = vmatpush.msra.mxu0 %v1196
        %1373 = vmatpush.msra.mxu0 %v1194
        %1374 = vmatpush.msra.mxu0 %v1192
        %1375 = vmatpush.msra.mxu0 %v1190
        %1376 = vmatmul.f32.gmra.mxu0 %v1255
        %v1377 = vpop.f32.mrf.mxu0
        %v1378 = vadd.f32 %v1337, %v1377
        %1379 = vmatmul.f32.gmra.mxu0 %v1258
        %v1380 = vpop.f32.mrf.mxu0
        %v1381 = vadd.f32 %v1340, %v1380
        %1382 = vmatmul.f32.gmra.mxu0 %v1261
        %v1383 = vpop.f32.mrf.mxu0
        %v1384 = vadd.f32 %v1343, %v1383
        %1385 = vmatmul.f32.gmra.mxu0 %v1264
        %v1386 = vpop.f32.mrf.mxu0
        %v1387 = vadd.f32 %v1346, %v1386
        %1388 = vmatmul.f32.gmra.mxu0 %v1267
        %v1389 = vpop.f32.mrf.mxu0
        %v1390 = vadd.f32 %v1349, %v1389
        %1391 = vmatmul.f32.gmra.mxu0 %v1270
        %v1392 = vpop.f32.mrf.mxu0
        %v1393 = vadd.f32 %v1352, %v1392
        %1394 = vmatmul.f32.gmra.mxu0 %v1273
        %v1395 = vpop.f32.mrf.mxu0
        %v1396 = vadd.f32 %v1355, %v1395
        %1397 = vmatmul.f32.gmra.mxu0 %v1276
        %v1398 = vpop.f32.mrf.mxu0
        %v1399 = vadd.f32 %v1358, %v1398
        %1400 = vdwg.mxu0
        %v1401 = vmax.f32 %v1378, 0.0
        %v1402 = vmax.f32 %v1381, 0.0
        %v1403 = vmax.f32 %v1384, 0.0
        %v1404 = vmax.f32 %v1387, 0.0
        %v1405 = vmax.f32 %v1390, 0.0
        %v1406 = vmax.f32 %v1393, 0.0
        %v1407 = vmax.f32 %v1396, 0.0
        %v1408 = vmax.f32 %v1399, 0.0
        %v1409 = vld [vmem:[%s9] sm:$0xff]
        %v1410 = vld [vmem:[%s9 + $0x8] sm:$0xff]
        %v1411 = vld [vmem:[%s9 + $0x10] sm:$0xff]
        %v1412 = vld [vmem:[%s9 + $0x18] sm:$0xff]
        %v1413 = vld [vmem:[%s9 + $0x20] sm:$0xff]
        %v1414 = vld [vmem:[%s9 + $0x28] sm:$0xff]
        %v1415 = vld [vmem:[%s9 + $0x30] sm:$0xff]
        %v1416 = vld [vmem:[%s9 + $0x38] sm:$0xff]
        %v1417 = vld [vmem:[%s9 + $0x40] sm:$0xff]
        %v1418 = vld [vmem:[%s9 + $0x48] sm:$0xff]
        %v1419 = vld [vmem:[%s9 + $0x50] sm:$0xff]
        %v1420 = vld [vmem:[%s9 + $0x58] sm:$0xff]
        %v1421 = vld [vmem:[%s9 + $0x60] sm:$0xff]
        %v1422 = vld [vmem:[%s9 + $0x68] sm:$0xff]
        %v1423 = vld [vmem:[%s9 + $0x70] sm:$0xff]
        %v1424 = vld [vmem:[%s9 + $0x78] sm:$0xff]
        %v1425 = vld [vmem:[%s9 + $0x80] sm:$0xff]
        %v1426 = vld [vmem:[%s9 + $0x88] sm:$0xff]
        %v1427 = vld [vmem:[%s9 + $0x90] sm:$0xff]
        %v1428 = vld [vmem:[%s9 + $0x98] sm:$0xff]
        %v1429 = vld [vmem:[%s9 + $0xa0] sm:$0xff]
        %v1430 = vld [vmem:[%s9 + $0xa8] sm:$0xff]
        %v1431 = vld [vmem:[%s9 + $0xb0] sm:$0xff]
        %v1432 = vld [vmem:[%s9 + $0xb8] sm:$0xff]
        %v1433 = vld [vmem:[%s10] sm:$0xff]
        %v1434 = vld [vmem:[%s10 + $0x8] sm:$0xff]
        %v1435 = vld [vmem:[%s10 + $0x10] sm:$0xff]
        %v1436 = vld [vmem:[%s10 + $0x18] sm:$0xff]
        %v1437 = vld [vmem:[%s10 + $0x20] sm:$0xff]
        %v1438 = vld [vmem:[%s10 + $0x28] sm:$0xff]
        %v1439 = vld [vmem:[%s10 + $0x30] sm:$0xff]
        %v1440 = vld [vmem:[%s10 + $0x38] sm:$0xff]
        %1449 = vrot.lane.b32.xlu0 %v1401, 126
        %v1450 = vpop.permute.xlu0 %1449
        %1451 = vrot.lane.b32.xlu0 %v1402, 126
        %v1452 = vpop.permute.xlu0 %1451
        %1453 = vrot.lane.b32.xlu0 %v1403, 126
        %v1454 = vpop.permute.xlu0 %1453
        %1455 = vrot.lane.b32.xlu0 %v1404, 126
        %v1456 = vpop.permute.xlu0 %1455
        %1457 = vrot.lane.b32.xlu0 %v1405, 126
        %v1458 = vpop.permute.xlu0 %1457
        %1459 = vrot.lane.b32.xlu0 %v1406, 126
        %v1460 = vpop.permute.xlu0 %1459
        %1461 = vrot.lane.b32.xlu0 %v1407, 126
        %v1462 = vpop.permute.xlu0 %1461
        %1463 = vrot.lane.b32.xlu0 %v1408, 126
        %v1464 = vpop.permute.xlu0 %1463
        %1473 = vrot.lane.b32.xlu0 %v1401, 2
        %v1474 = vpop.permute.xlu0 %1473
        %1475 = vrot.lane.b32.xlu0 %v1402, 2
        %v1476 = vpop.permute.xlu0 %1475
        %1477 = vrot.lane.b32.xlu0 %v1403, 2
        %v1478 = vpop.permute.xlu0 %1477
        %1479 = vrot.lane.b32.xlu0 %v1404, 2
        %v1480 = vpop.permute.xlu0 %1479
        %1481 = vrot.lane.b32.xlu0 %v1405, 2
        %v1482 = vpop.permute.xlu0 %1481
        %1483 = vrot.lane.b32.xlu0 %v1406, 2
        %v1484 = vpop.permute.xlu0 %1483
        %1485 = vrot.lane.b32.xlu0 %v1407, 2
        %v1486 = vpop.permute.xlu0 %1485
        %1487 = vrot.lane.b32.xlu0 %v1408, 2
        %v1488 = vpop.permute.xlu0 %1487
        %1497 = vrot.lane.b32.xlu0 %v1401, 4
        %v1498 = vpop.permute.xlu0 %1497
        %1499 = vrot.lane.b32.xlu0 %v1402, 4
        %v1500 = vpop.permute.xlu0 %1499
        %1501 = vrot.lane.b32.xlu0 %v1403, 4
        %v1502 = vpop.permute.xlu0 %1501
        %1503 = vrot.lane.b32.xlu0 %v1404, 4
        %v1504 = vpop.permute.xlu0 %1503
        %1505 = vrot.lane.b32.xlu0 %v1405, 4
        %v1506 = vpop.permute.xlu0 %1505
        %1507 = vrot.lane.b32.xlu0 %v1406, 4
        %v1508 = vpop.permute.xlu0 %1507
        %1509 = vrot.lane.b32.xlu0 %v1407, 4
        %v1510 = vpop.permute.xlu0 %1509
        %1511 = vrot.lane.b32.xlu0 %v1408, 4
        %v1512 = vpop.permute.xlu0 %1511
        %1521 = vrot.lane.b32.xlu0 %v1401, 6
        %v1522 = vpop.permute.xlu0 %1521
        %1523 = vrot.lane.b32.xlu0 %v1402, 6
        %v1524 = vpop.permute.xlu0 %1523
        %1525 = vrot.lane.b32.xlu0 %v1403, 6
        %v1526 = vpop.permute.xlu0 %1525
        %1527 = vrot.lane.b32.xlu0 %v1404, 6
        %v1528 = vpop.permute.xlu0 %1527
        %1529 = vrot.lane.b32.xlu0 %v1405, 6
        %v1530 = vpop.permute.xlu0 %1529
        %1531 = vrot.lane.b32.xlu0 %v1406, 6
        %v1532 = vpop.permute.xlu0 %1531
        %1533 = vrot.lane.b32.xlu0 %v1407, 6
        %v1534 = vpop.permute.xlu0 %1533
        %1535 = vrot.lane.b32.xlu0 %v1408, 6
        %v1536 = vpop.permute.xlu0 %1535
        %v1545 = vsel %vm452, %v1450, %v1401
        %v1546 = vsel %vm452, %v1452, %v1402
        %v1547 = vsel %vm452, %v1454, %v1403
        %v1548 = vsel %vm452, %v1456, %v1404
        %v1549 = vsel %vm452, %v1458, %v1405
        %v1550 = vsel %vm452, %v1460, %v1406
        %v1551 = vsel %vm452, %v1462, %v1407
        %v1552 = vsel %vm452, %v1464, %v1408
        %v1553 = vsel %vm541, %v1545, %v1474
        %v1554 = vsel %vm541, %v1546, %v1476
        %v1555 = vsel %vm541, %v1547, %v1478
        %v1556 = vsel %vm541, %v1548, %v1480
        %v1557 = vsel %vm541, %v1549, %v1482
        %v1558 = vsel %vm541, %v1550, %v1484
        %v1559 = vsel %vm541, %v1551, %v1486
        %v1560 = vsel %vm541, %v1552, %v1488
        %v1561 = vsel %vm544, %v1553, %v1498
        %v1562 = vsel %vm544, %v1554, %v1500
        %v1563 = vsel %vm544, %v1555, %v1502
        %v1564 = vsel %vm544, %v1556, %v1504
        %v1565 = vsel %vm544, %v1557, %v1506
        %v1566 = vsel %vm544, %v1558, %v1508
        %v1567 = vsel %vm544, %v1559, %v1510
        %v1568 = vsel %vm544, %v1560, %v1512
        %v1569 = vsel %vm547, %v1561, %v1522
        %v1570 = vsel %vm547, %v1562, %v1524
        %v1571 = vsel %vm547, %v1563, %v1526
        %v1572 = vsel %vm547, %v1564, %v1528
        %v1573 = vsel %vm547, %v1565, %v1530
        %v1574 = vsel %vm547, %v1566, %v1532
        %v1575 = vsel %vm547, %v1567, %v1534
        %v1576 = vsel %vm547, %v1568, %v1536
        %1585 = vrot.lane.b32.xlu0 %v1569, 127
        %v1586 = vpop.permute.xlu0 %1585
        %1587 = vrot.lane.b32.xlu0 %v1570, 127
        %v1588 = vpop.permute.xlu0 %1587
        %1589 = vrot.lane.b32.xlu0 %v1571, 127
        %v1590 = vpop.permute.xlu0 %1589
        %1591 = vrot.lane.b32.xlu0 %v1572, 127
        %v1592 = vpop.permute.xlu0 %1591
        %1593 = vrot.lane.b32.xlu0 %v1573, 127
        %v1594 = vpop.permute.xlu0 %1593
        %1595 = vrot.lane.b32.xlu0 %v1574, 127
        %v1596 = vpop.permute.xlu0 %1595
        %1597 = vrot.lane.b32.xlu0 %v1575, 127
        %v1598 = vpop.permute.xlu0 %1597
        %1599 = vrot.lane.b32.xlu0 %v1576, 127
        %v1600 = vpop.permute.xlu0 %1599
        %1609 = vrot.lane.b32.xlu0 %v1569, 126
        %v1610 = vpop.permute.xlu0 %1609
        %1611 = vrot.lane.b32.xlu0 %v1570, 126
        %v1612 = vpop.permute.xlu0 %1611
        %1613 = vrot.lane.b32.xlu0 %v1571, 126
        %v1614 = vpop.permute.xlu0 %1613
        %1615 = vrot.lane.b32.xlu0 %v1572, 126
        %v1616 = vpop.permute.xlu0 %1615
        %1617 = vrot.lane.b32.xlu0 %v1573, 126
        %v1618 = vpop.permute.xlu0 %1617
        %1619 = vrot.lane.b32.xlu0 %v1574, 126
        %v1620 = vpop.permute.xlu0 %1619
        %1621 = vrot.lane.b32.xlu0 %v1575, 126
        %v1622 = vpop.permute.xlu0 %1621
        %1623 = vrot.lane.b32.xlu0 %v1576, 126
        %v1624 = vpop.permute.xlu0 %1623
        %1633 = vrot.lane.b32.xlu0 %v1569, 125
        %v1634 = vpop.permute.xlu0 %1633
        %1635 = vrot.lane.b32.xlu0 %v1570, 125
        %v1636 = vpop.permute.xlu0 %1635
        %1637 = vrot.lane.b32.xlu0 %v1571, 125
        %v1638 = vpop.permute.xlu0 %1637
        %1639 = vrot.lane.b32.xlu0 %v1572, 125
        %v1640 = vpop.permute.xlu0 %1639
        %1641 = vrot.lane.b32.xlu0 %v1573, 125
        %v1642 = vpop.permute.xlu0 %1641
        %1643 = vrot.lane.b32.xlu0 %v1574, 125
        %v1644 = vpop.permute.xlu0 %1643
        %1645 = vrot.lane.b32.xlu0 %v1575, 125
        %v1646 = vpop.permute.xlu0 %1645
        %1647 = vrot.lane.b32.xlu0 %v1576, 125
        %v1648 = vpop.permute.xlu0 %1647
        %1657 = vrot.lane.b32.xlu0 %v1569, 124
        %v1658 = vpop.permute.xlu0 %1657
        %1659 = vrot.lane.b32.xlu0 %v1570, 124
        %v1660 = vpop.permute.xlu0 %1659
        %1661 = vrot.lane.b32.xlu0 %v1571, 124
        %v1662 = vpop.permute.xlu0 %1661
        %1663 = vrot.lane.b32.xlu0 %v1572, 124
        %v1664 = vpop.permute.xlu0 %1663
        %1665 = vrot.lane.b32.xlu0 %v1573, 124
        %v1666 = vpop.permute.xlu0 %1665
        %1667 = vrot.lane.b32.xlu0 %v1574, 124
        %v1668 = vpop.permute.xlu0 %1667
        %1669 = vrot.lane.b32.xlu0 %v1575, 124
        %v1670 = vpop.permute.xlu0 %1669
        %1671 = vrot.lane.b32.xlu0 %v1576, 124
        %v1672 = vpop.permute.xlu0 %1671
        %1682 = vset.pattern.permute.xlu0 0
        %1683 = vperm.xlu0 %1682, %v1433
        %v1684 = vpop.permute.xlu0 %1683
        %1687 = vset.pattern.permute.xlu0 0
        %1688 = vperm.xlu0 %1687, %v1434
        %v1689 = vpop.permute.xlu0 %1688
        %1692 = vset.pattern.permute.xlu0 0
        %1693 = vperm.xlu0 %1692, %v1435
        %v1694 = vpop.permute.xlu0 %1693
        %1697 = vset.pattern.permute.xlu0 0
        %1698 = vperm.xlu0 %1697, %v1436
        %v1699 = vpop.permute.xlu0 %1698
        %1702 = vset.pattern.permute.xlu0 0
        %1703 = vperm.xlu0 %1702, %v1437
        %v1704 = vpop.permute.xlu0 %1703
        %1707 = vset.pattern.permute.xlu0 0
        %1708 = vperm.xlu0 %1707, %v1438
        %v1709 = vpop.permute.xlu0 %1708
        %1712 = vset.pattern.permute.xlu0 0
        %1713 = vperm.xlu0 %1712, %v1439
        %v1714 = vpop.permute.xlu0 %1713
        %1717 = vset.pattern.permute.xlu0 0
        %1718 = vperm.xlu0 %1717, %v1440
        %v1719 = vpop.permute.xlu0 %1718
        %v1722 = vsel %vm1253, %v1411, 0
        %v1725 = vsel %vm1253, %v1414, 0
        %v1728 = vsel %vm1253, %v1417, 0
        %v1731 = vsel %vm1253, %v1420, 0
        %v1734 = vsel %vm1253, %v1423, 0
        %v1737 = vsel %vm1253, %v1426, 0
        %v1740 = vsel %vm1253, %v1429, 0
        %v1743 = vsel %vm1253, %v1432, 0
        %1745 = vmatpush.msra.mxu0 %v1600
        %1746 = vmatpush.msra.mxu0 %v1598
        %1747 = vmatpush.msra.mxu0 %v1596
        %1748 = vmatpush.msra.mxu0 %v1594
        %1749 = vmatpush.msra.mxu0 %v1592
        %1750 = vmatpush.msra.mxu0 %v1590
        %1751 = vmatpush.msra.mxu0 %v1588
        %1752 = vmatpush.msra.mxu0 %v1586
        %1753 = vmatpush.msra.mxu0 %v1576
        %1754 = vmatpush.msra.mxu0 %v1575
        %1755 = vmatpush.msra.mxu0 %v1574
        %1756 = vmatpush.msra.mxu0 %v1573
        %1757 = vmatpush.msra.mxu0 %v1572
        %1758 = vmatpush.msra.mxu0 %v1571
        %1759 = vmatpush.msra.mxu0 %v1570
        %1760 = vmatpush.msra.mxu0 %v1569
        %1761 = vmatmul.f32.gmra.mxu0 %v1409
        %v1762 = vpop.f32.mrf.mxu0
        %v1763 = vadd.f32 %v1684, %v1762
        %1764 = vmatmul.f32.gmra.mxu0 %v1412
        %v1765 = vpop.f32.mrf.mxu0
        %v1766 = vadd.f32 %v1689, %v1765
        %1767 = vmatmul.f32.gmra.mxu0 %v1415
        %v1768 = vpop.f32.mrf.mxu0
        %v1769 = vadd.f32 %v1694, %v1768
        %1770 = vmatmul.f32.gmra.mxu0 %v1418
        %v1771 = vpop.f32.mrf.mxu0
        %v1772 = vadd.f32 %v1699, %v1771
        %1773 = vmatmul.f32.gmra.mxu0 %v1421
        %v1774 = vpop.f32.mrf.mxu0
        %v1775 = vadd.f32 %v1704, %v1774
        %1776 = vmatmul.f32.gmra.mxu0 %v1424
        %v1777 = vpop.f32.mrf.mxu0
        %v1778 = vadd.f32 %v1709, %v1777
        %1779 = vmatmul.f32.gmra.mxu0 %v1427
        %v1780 = vpop.f32.mrf.mxu0
        %v1781 = vadd.f32 %v1714, %v1780
        %1782 = vmatmul.f32.gmra.mxu0 %v1430
        %v1783 = vpop.f32.mrf.mxu0
        %v1784 = vadd.f32 %v1719, %v1783
        %1785 = vdwg.mxu0
        %1786 = vmatpush.msra.mxu0 %v1648
        %1787 = vmatpush.msra.mxu0 %v1646
        %1788 = vmatpush.msra.mxu0 %v1644
        %1789 = vmatpush.msra.mxu0 %v1642
        %1790 = vmatpush.msra.mxu0 %v1640
        %1791 = vmatpush.msra.mxu0 %v1638
        %1792 = vmatpush.msra.mxu0 %v1636
        %1793 = vmatpush.msra.mxu0 %v1634
        %1794 = vmatpush.msra.mxu0 %v1624
        %1795 = vmatpush.msra.mxu0 %v1622
        %1796 = vmatpush.msra.mxu0 %v1620
        %1797 = vmatpush.msra.mxu0 %v1618
        %1798 = vmatpush.msra.mxu0 %v1616
        %1799 = vmatpush.msra.mxu0 %v1614
        %1800 = vmatpush.msra.mxu0 %v1612
        %1801 = vmatpush.msra.mxu0 %v1610
        %1802 = vmatmul.f32.gmra.mxu0 %v1410
        %v1803 = vpop.f32.mrf.mxu0
        %v1804 = vadd.f32 %v1763, %v1803
        %1805 = vmatmul.f32.gmra.mxu0 %v1413
        %v1806 = vpop.f32.mrf.mxu0
        %v1807 = vadd.f32 %v1766, %v1806
        %1808 = vmatmul.f32.gmra.mxu0 %v1416
        %v1809 = vpop.f32.mrf.mxu0
        %v1810 = vadd.f32 %v1769, %v1809
        %1811 = vmatmul.f32.gmra.mxu0 %v1419
        %v1812 = vpop.f32.mrf.mxu0
        %v1813 = vadd.f32 %v1772, %v1812
        %1814 = vmatmul.f32.gmra.mxu0 %v1422
        %v1815 = vpop.f32.mrf.mxu0
        %v1816 = vadd.f32 %v1775, %v1815
        %1817 = vmatmul.f32.gmra.mxu0 %v1425
        %v1818 = vpop.f32.mrf.mxu0
        %v1819 = vadd.f32 %v1778, %v1818
        %1820 = vmatmul.f32.gmra.mxu0 %v1428
        %v1821 = vpop.f32.mrf.mxu0
        %v1822 = vadd.f32 %v1781, %v1821
        %1823 = vmatmul.f32.gmra.mxu0 %v1431
        %v1824 = vpop.f32.mrf.mxu0
        %v1825 = vadd.f32 %v1784, %v1824
        %1826 = vdwg.mxu0
        %1827 = vmatpush.msra.mxu0 0.0
        %1828 = vmatpush.msra.mxu0 0.0
        %1829 = vmatpush.msra.mxu0 0.0
        %1830 = vmatpush.msra.mxu0 0.0
        %1831 = vmatpush.msra.mxu0 0.0
        %1832 = vmatpush.msra.mxu0 0.0
        %1833 = vmatpush.msra.mxu0 0.0
        %1834 = vmatpush.msra.mxu0 0.0
        %1835 = vmatpush.msra.mxu0 %v1672
        %1836 = vmatpush.msra.mxu0 %v1670
        %1837 = vmatpush.msra.mxu0 %v1668
        %1838 = vmatpush.msra.mxu0 %v1666
        %1839 = vmatpush.msra.mxu0 %v1664
        %1840 = vmatpush.msra.mxu0 %v1662
        %1841 = vmatpush.msra.mxu0 %v1660
        %1842 = vmatpush.msra.mxu0 %v1658
        %1843 = vmatmul.f32.gmra.mxu0 %v1722
        %v1844 = vpop.f32.mrf.mxu0
        %v1845 = vadd.f32 %v1804, %v1844
        %1846 = vmatmul.f32.gmra.mxu0 %v1725
        %v1847 = vpop.f32.mrf.mxu0
        %v1848 = vadd.f32 %v1807, %v1847
        %1849 = vmatmul.f32.gmra.mxu0 %v1728
        %v1850 = vpop.f32.mrf.mxu0
        %v1851 = vadd.f32 %v1810, %v1850
        %1852 = vmatmul.f32.gmra.mxu0 %v1731
        %v1853 = vpop.f32.mrf.mxu0
        %v1854 = vadd.f32 %v1813, %v1853
        %1855 = vmatmul.f32.gmra.mxu0 %v1734
        %v1856 = vpop.f32.mrf.mxu0
        %v1857 = vadd.f32 %v1816, %v1856
        %1858 = vmatmul.f32.gmra.mxu0 %v1737
        %v1859 = vpop.f32.mrf.mxu0
        %v1860 = vadd.f32 %v1819, %v1859
        %1861 = vmatmul.f32.gmra.mxu0 %v1740
        %v1862 = vpop.f32.mrf.mxu0
        %v1863 = vadd.f32 %v1822, %v1862
        %1864 = vmatmul.f32.gmra.mxu0 %v1743
        %v1865 = vpop.f32.mrf.mxu0
        %v1866 = vadd.f32 %v1825, %v1865
        %1867 = vdwg.mxu0
        %v1868 = vmax.f32 %v1845, 0.0
        %v1869 = vmax.f32 %v1848, 0.0
        %v1870 = vmax.f32 %v1851, 0.0
        %v1871 = vmax.f32 %v1854, 0.0
        %v1872 = vmax.f32 %v1857, 0.0
        %v1873 = vmax.f32 %v1860, 0.0
        %v1874 = vmax.f32 %v1863, 0.0
        %v1875 = vmax.f32 %v1866, 0.0
        %v1876 = vld [vmem:[%s11] sm:$0xff]
        %v1877 = vld [vmem:[%s11 + $0x8] sm:$0xff]
        %v1878 = vld [vmem:[%s11 + $0x10] sm:$0xff]
        %v1879 = vld [vmem:[%s11 + $0x18] sm:$0xff]
        %v1880 = vld [vmem:[%s11 + $0x20] sm:$0xff]
        %v1881 = vld [vmem:[%s11 + $0x28] sm:$0xff]
        %v1882 = vld [vmem:[%s11 + $0x30] sm:$0xff]
        %v1883 = vld [vmem:[%s11 + $0x38] sm:$0xff]
        %v1884 = vld [vmem:[%s11 + $0x40] sm:$0xff]
        %v1885 = vld [vmem:[%s11 + $0x48] sm:$0xff]
        %v1886 = vld [vmem:[%s11 + $0x50] sm:$0xff]
        %v1887 = vld [vmem:[%s11 + $0x58] sm:$0xff]
        %v1888 = vld [vmem:[%s11 + $0x60] sm:$0xff]
        %v1889 = vld [vmem:[%s11 + $0x68] sm:$0xff]
        %v1890 = vld [vmem:[%s11 + $0x70] sm:$0xff]
        %v1891 = vld [vmem:[%s11 + $0x78] sm:$0xff]
        %v1892 = vld [vmem:[%s11 + $0x80] sm:$0xff]
        %v1893 = vld [vmem:[%s11 + $0x88] sm:$0xff]
        %v1894 = vld [vmem:[%s11 + $0x90] sm:$0xff]
        %v1895 = vld [vmem:[%s11 + $0x98] sm:$0xff]
        %v1896 = vld [vmem:[%s11 + $0xa0] sm:$0xff]
        %v1897 = vld [vmem:[%s11 + $0xa8] sm:$0xff]
        %v1898 = vld [vmem:[%s11 + $0xb0] sm:$0xff]
        %v1899 = vld [vmem:[%s11 + $0xb8] sm:$0xff]
        %v1900 = vld [vmem:[#allocation2] sm:$0x1]
        %1909 = vrot.lane.b32.xlu0 %v1868, 127
        %v1910 = vpop.permute.xlu0 %1909
        %1911 = vrot.lane.b32.xlu0 %v1869, 127
        %v1912 = vpop.permute.xlu0 %1911
        %1913 = vrot.lane.b32.xlu0 %v1870, 127
        %v1914 = vpop.permute.xlu0 %1913
        %1915 = vrot.lane.b32.xlu0 %v1871, 127
        %v1916 = vpop.permute.xlu0 %1915
        %1917 = vrot.lane.b32.xlu0 %v1872, 127
        %v1918 = vpop.permute.xlu0 %1917
        %1919 = vrot.lane.b32.xlu0 %v1873, 127
        %v1920 = vpop.permute.xlu0 %1919
        %1921 = vrot.lane.b32.xlu0 %v1874, 127
        %v1922 = vpop.permute.xlu0 %1921
        %1923 = vrot.lane.b32.xlu0 %v1875, 127
        %v1924 = vpop.permute.xlu0 %1923
        %1933 = vrot.lane.b32.xlu0 %v1868, 1
        %v1934 = vpop.permute.xlu0 %1933
        %1935 = vrot.lane.b32.xlu0 %v1869, 1
        %v1936 = vpop.permute.xlu0 %1935
        %1937 = vrot.lane.b32.xlu0 %v1870, 1
        %v1938 = vpop.permute.xlu0 %1937
        %1939 = vrot.lane.b32.xlu0 %v1871, 1
        %v1940 = vpop.permute.xlu0 %1939
        %1941 = vrot.lane.b32.xlu0 %v1872, 1
        %v1942 = vpop.permute.xlu0 %1941
        %1943 = vrot.lane.b32.xlu0 %v1873, 1
        %v1944 = vpop.permute.xlu0 %1943
        %1945 = vrot.lane.b32.xlu0 %v1874, 1
        %v1946 = vpop.permute.xlu0 %1945
        %1947 = vrot.lane.b32.xlu0 %v1875, 1
        %v1948 = vpop.permute.xlu0 %1947
        %1957 = vrot.lane.b32.xlu0 %v1868, 3
        %v1958 = vpop.permute.xlu0 %1957
        %1959 = vrot.lane.b32.xlu0 %v1869, 3
        %v1960 = vpop.permute.xlu0 %1959
        %1961 = vrot.lane.b32.xlu0 %v1870, 3
        %v1962 = vpop.permute.xlu0 %1961
        %1963 = vrot.lane.b32.xlu0 %v1871, 3
        %v1964 = vpop.permute.xlu0 %1963
        %1965 = vrot.lane.b32.xlu0 %v1872, 3
        %v1966 = vpop.permute.xlu0 %1965
        %1967 = vrot.lane.b32.xlu0 %v1873, 3
        %v1968 = vpop.permute.xlu0 %1967
        %1969 = vrot.lane.b32.xlu0 %v1874, 3
        %v1970 = vpop.permute.xlu0 %1969
        %1971 = vrot.lane.b32.xlu0 %v1875, 3
        %v1972 = vpop.permute.xlu0 %1971
        %v1981 = vsel %vm452, %v1910, %v1934
        %v1982 = vsel %vm452, %v1912, %v1936
        %v1983 = vsel %vm452, %v1914, %v1938
        %v1984 = vsel %vm452, %v1916, %v1940
        %v1985 = vsel %vm452, %v1918, %v1942
        %v1986 = vsel %vm452, %v1920, %v1944
        %v1987 = vsel %vm452, %v1922, %v1946
        %v1988 = vsel %vm452, %v1924, %v1948
        %v1989 = vsel %vm454, %v1981, %v1958
        %v1990 = vsel %vm454, %v1982, %v1960
        %v1991 = vsel %vm454, %v1983, %v1962
        %v1992 = vsel %vm454, %v1984, %v1964
        %v1993 = vsel %vm454, %v1985, %v1966
        %v1994 = vsel %vm454, %v1986, %v1968
        %v1995 = vsel %vm454, %v1987, %v1970
        %v1996 = vsel %vm454, %v1988, %v1972
        %2005 = vrot.lane.b32.xlu0 %v1989, 127
        %v2006 = vpop.permute.xlu0 %2005
        %2007 = vrot.lane.b32.xlu0 %v1990, 127
        %v2008 = vpop.permute.xlu0 %2007
        %2009 = vrot.lane.b32.xlu0 %v1991, 127
        %v2010 = vpop.permute.xlu0 %2009
        %2011 = vrot.lane.b32.xlu0 %v1992, 127
        %v2012 = vpop.permute.xlu0 %2011
        %2013 = vrot.lane.b32.xlu0 %v1993, 127
        %v2014 = vpop.permute.xlu0 %2013
        %2015 = vrot.lane.b32.xlu0 %v1994, 127
        %v2016 = vpop.permute.xlu0 %2015
        %2017 = vrot.lane.b32.xlu0 %v1995, 127
        %v2018 = vpop.permute.xlu0 %2017
        %2019 = vrot.lane.b32.xlu0 %v1996, 127
        %v2020 = vpop.permute.xlu0 %2019
        %2029 = vrot.lane.b32.xlu0 %v1989, 126
        %v2030 = vpop.permute.xlu0 %2029
        %2031 = vrot.lane.b32.xlu0 %v1990, 126
        %v2032 = vpop.permute.xlu0 %2031
        %2033 = vrot.lane.b32.xlu0 %v1991, 126
        %v2034 = vpop.permute.xlu0 %2033
        %2035 = vrot.lane.b32.xlu0 %v1992, 126
        %v2036 = vpop.permute.xlu0 %2035
        %2037 = vrot.lane.b32.xlu0 %v1993, 126
        %v2038 = vpop.permute.xlu0 %2037
        %2039 = vrot.lane.b32.xlu0 %v1994, 126
        %v2040 = vpop.permute.xlu0 %2039
        %2041 = vrot.lane.b32.xlu0 %v1995, 126
        %v2042 = vpop.permute.xlu0 %2041
        %2043 = vrot.lane.b32.xlu0 %v1996, 126
        %v2044 = vpop.permute.xlu0 %2043
        %2054 = vset.pattern.permute.xlu0 0
        %2055 = vperm.xlu0 %2054, %v1876
        %v2056 = vpop.permute.xlu0 %2055
        %2059 = vset.pattern.permute.xlu0 0
        %2060 = vperm.xlu0 %2059, %v1877
        %v2061 = vpop.permute.xlu0 %2060
        %2064 = vset.pattern.permute.xlu0 0
        %2065 = vperm.xlu0 %2064, %v1878
        %v2066 = vpop.permute.xlu0 %2065
        %2069 = vset.pattern.permute.xlu0 0
        %2070 = vperm.xlu0 %2069, %v1879
        %v2071 = vpop.permute.xlu0 %2070
        %2074 = vset.pattern.permute.xlu0 0
        %2075 = vperm.xlu0 %2074, %v1880
        %v2076 = vpop.permute.xlu0 %2075
        %2079 = vset.pattern.permute.xlu0 0
        %2080 = vperm.xlu0 %2079, %v1881
        %v2081 = vpop.permute.xlu0 %2080
        %2084 = vset.pattern.permute.xlu0 0
        %2085 = vperm.xlu0 %2084, %v1882
        %v2086 = vpop.permute.xlu0 %2085
        %2089 = vset.pattern.permute.xlu0 0
        %2090 = vperm.xlu0 %2089, %v1883
        %v2091 = vpop.permute.xlu0 %2090
        %2094 = vset.pattern.permute.xlu0 0
        %2095 = vperm.xlu0 %2094, %v1884
        %v2096 = vpop.permute.xlu0 %2095
        %2099 = vset.pattern.permute.xlu0 0
        %2100 = vperm.xlu0 %2099, %v1885
        %v2101 = vpop.permute.xlu0 %2100
        %2104 = vset.pattern.permute.xlu0 0
        %2105 = vperm.xlu0 %2104, %v1886
        %v2106 = vpop.permute.xlu0 %2105
        %2109 = vset.pattern.permute.xlu0 0
        %2110 = vperm.xlu0 %2109, %v1887
        %v2111 = vpop.permute.xlu0 %2110
        %2114 = vset.pattern.permute.xlu0 0
        %2115 = vperm.xlu0 %2114, %v1888
        %v2116 = vpop.permute.xlu0 %2115
        %2119 = vset.pattern.permute.xlu0 0
        %2120 = vperm.xlu0 %2119, %v1889
        %v2121 = vpop.permute.xlu0 %2120
        %2124 = vset.pattern.permute.xlu0 0
        %2125 = vperm.xlu0 %2124, %v1890
        %v2126 = vpop.permute.xlu0 %2125
        %2129 = vset.pattern.permute.xlu0 0
        %2130 = vperm.xlu0 %2129, %v1891
        %v2131 = vpop.permute.xlu0 %2130
        %2134 = vset.pattern.permute.xlu0 0
        %2135 = vperm.xlu0 %2134, %v1892
        %v2136 = vpop.permute.xlu0 %2135
        %2139 = vset.pattern.permute.xlu0 0
        %2140 = vperm.xlu0 %2139, %v1893
        %v2141 = vpop.permute.xlu0 %2140
        %2144 = vset.pattern.permute.xlu0 0
        %2145 = vperm.xlu0 %2144, %v1894
        %v2146 = vpop.permute.xlu0 %2145
        %2149 = vset.pattern.permute.xlu0 0
        %2150 = vperm.xlu0 %2149, %v1895
        %v2151 = vpop.permute.xlu0 %2150
        %2154 = vset.pattern.permute.xlu0 0
        %2155 = vperm.xlu0 %2154, %v1896
        %v2156 = vpop.permute.xlu0 %2155
        %2159 = vset.pattern.permute.xlu0 0
        %2160 = vperm.xlu0 %2159, %v1897
        %v2161 = vpop.permute.xlu0 %2160
        %2164 = vset.pattern.permute.xlu0 0
        %2165 = vperm.xlu0 %2164, %v1898
        %v2166 = vpop.permute.xlu0 %2165
        %2169 = vset.pattern.permute.xlu0 0
        %2170 = vperm.xlu0 %2169, %v1899
        %v2171 = vpop.permute.xlu0 %2170
        %v2173 = vmul.f32 %v2056, %v1989
        %v2174 = vmul.f32 %v2061, %v1990
        %v2175 = vmul.f32 %v2066, %v1991
        %v2176 = vmul.f32 %v2071, %v1992
        %v2177 = vmul.f32 %v2076, %v1993
        %v2178 = vmul.f32 %v2081, %v1994
        %v2179 = vmul.f32 %v2086, %v1995
        %v2180 = vmul.f32 %v2091, %v1996
        %v2181 = vmul.f32 %v2096, %v2006
        %v2182 = vmul.f32 %v2101, %v2008
        %v2183 = vmul.f32 %v2106, %v2010
        %v2184 = vmul.f32 %v2111, %v2012
        %v2185 = vmul.f32 %v2116, %v2014
        %v2186 = vmul.f32 %v2121, %v2016
        %v2187 = vmul.f32 %v2126, %v2018
        %v2188 = vmul.f32 %v2131, %v2020
        %v2189 = vmul.f32 %v2136, %v2030
        %v2190 = vmul.f32 %v2141, %v2032
        %v2191 = vmul.f32 %v2146, %v2034
        %v2192 = vmul.f32 %v2151, %v2036
        %v2193 = vmul.f32 %v2156, %v2038
        %v2194 = vmul.f32 %v2161, %v2040
        %v2195 = vmul.f32 %v2166, %v2042
        %v2196 = vmul.f32 %v2171, %v2044
        %vm2197 = vcmask 130048
        %v2198 = vsel %vm2197, %v2173, 0.0
        %v2199 = vsel %vm2197, %v2174, 0.0
        %v2200 = vadd.f32 %v2198, %v2199
        %v2201 = vsel %vm2197, %v2175, 0.0
        %v2202 = vadd.f32 %v2200, %v2201
        %v2203 = vsel %vm2197, %v2176, 0.0
        %v2204 = vadd.f32 %v2202, %v2203
        %v2205 = vsel %vm2197, %v2177, 0.0
        %v2206 = vadd.f32 %v2204, %v2205
        %v2207 = vsel %vm2197, %v2178, 0.0
        %v2208 = vadd.f32 %v2206, %v2207
        %v2209 = vsel %vm2197, %v2179, 0.0
        %v2210 = vadd.f32 %v2208, %v2209
        %v2211 = vsel %vm2197, %v2180, 0.0
        %v2212 = vadd.f32 %v2210, %v2211
        %v2213 = vsel %vm2197, %v2181, 0.0
        %v2214 = vadd.f32 %v2212, %v2213
        %v2215 = vsel %vm2197, %v2182, 0.0
        %v2216 = vadd.f32 %v2214, %v2215
        %v2217 = vsel %vm2197, %v2183, 0.0
        %v2218 = vadd.f32 %v2216, %v2217
        %v2219 = vsel %vm2197, %v2184, 0.0
        %v2220 = vadd.f32 %v2218, %v2219
        %v2221 = vsel %vm2197, %v2185, 0.0
        %v2222 = vadd.f32 %v2220, %v2221
        %v2223 = vsel %vm2197, %v2186, 0.0
        %v2224 = vadd.f32 %v2222, %v2223
        %v2225 = vsel %vm2197, %v2187, 0.0
        %v2226 = vadd.f32 %v2224, %v2225
        %v2227 = vsel %vm2197, %v2188, 0.0
        %v2228 = vadd.f32 %v2226, %v2227
        %v2229 = vsel %vm2197, %v2189, 0.0
        %v2230 = vadd.f32 %v2228, %v2229
        %v2231 = vsel %vm2197, %v2190, 0.0
        %v2232 = vadd.f32 %v2230, %v2231
        %v2233 = vsel %vm2197, %v2191, 0.0
        %v2234 = vadd.f32 %v2232, %v2233
        %v2235 = vsel %vm2197, %v2192, 0.0
        %v2236 = vadd.f32 %v2234, %v2235
        %v2237 = vsel %vm2197, %v2193, 0.0
        %v2238 = vadd.f32 %v2236, %v2237
        %v2239 = vsel %vm2197, %v2194, 0.0
        %v2240 = vadd.f32 %v2238, %v2239
        %v2241 = vsel %vm2197, %v2195, 0.0
        %v2242 = vadd.f32 %v2240, %v2241
        %v2243 = vsel %vm2197, %v2196, 0.0
        %v2244 = vadd.f32 %v2242, %v2243
        %v2245 = vrot.slane %v2244, 4
        %v2246 = vadd.f32 %v2244, %v2245
        %v2247 = vrot.slane %v2246, 2
        %v2248 = vadd.f32 %v2246, %v2247
        %v2249 = vrot.slane %v2248, 1
        %v2250 = vadd.f32 %v2248, %v2249
        %2252 = vset.pattern.permute.xlu0 0
        %2253 = vperm.xlu0 %2252, %v1900
        %v2254 = vpop.permute.xlu0 %2253
        %v2256 = vperm.slane %v2254, 0
        %v2257 = vadd.f32 %v2250, %v2256
        %v2258 = vmax.f32 %v2257, 0.0
        %vm2259 = vcmask 122880
        %2260 = vst.msk [vmem:[%s432] sm:$0x1] %vm2259, %v2258
        %s2261 = sand.u32 %s315, 1
        %s2262 = scalar_lea.sflag [#allocation4], %s2261
        %s2263 = sand.u32 %s315, 1
        %s2264 = scalar_lea.vmem [#allocation3], %s2263
        // Predicated region
        $region73: #{neural_network_forward.1} parent=71 // pred_check
          %p2265 = pneg %p325
        $region74: #{neural_network_forward.1} parent=71 // pred_check_branch
          %2267 = sbr.rel (%p2265) target = $region76
        $region75: #{neural_network_forward.1} parent=71 // pred_region
          %2269 = vsyncadd %s2262, 0
          %s2270 = scalar_lea.hbm %s13, %s29
          %s2272 = sshll.u32 %s2264, 4
          %s2273 = int_to_ptr.vmem [resolvable:$true] %s2272
          %s2274 = sshll.u32 %s2270, 4
          %s2275 = int_to_ptr.hbm [resolvable:$true] %s2274
          %2277 = dma.vmem_to_hbm [thread:$0]  %s2273, 16, %s2275, %s2262
        $region76: #{neural_network_forward.1} parent=71 // pred_fallthru
          _
      $region72: #{neural_network_forward.1} parent=5 // pred_fallthru
        _
      %p2278 = scmp.le.s32.totalorder 2, %s24
      // Predicated region
      $region77: #{neural_network_forward.1} parent=5 // pred_check
        %p2279 = pneg %p2278
      $region78: #{neural_network_forward.1} parent=5 // pred_check_branch
        %2281 = sbr.rel (%p2279) target = $region80
      $region79: #{neural_network_forward.1} parent=5 // pred_region
        %s2282 = ssub.s32 %s24, 2
        // Predicated region
        $region81: #{neural_network_forward.1} parent=79 // pred_check
          %p2283 = pneg %p331
        $region82: #{neural_network_forward.1} parent=79 // pred_check_branch
          %2285 = sbr.rel (%p2283) target = $region84
        $region83: #{neural_network_forward.1} parent=79 // pred_region
          %s2286 = sand.u32 %s316, 1
          %s2287 = scalar_lea.sflag [#allocation4], %s2286
          %s2288 = sand.u32 %s316, 1
          %s2289 = scalar_lea.vmem [#allocation3], %s2288
          %2291 = dma.done %s2287, 16
        $region84: #{neural_network_forward.1} parent=79 // pred_fallthru
          _
      $region80: #{neural_network_forward.1} parent=5 // pred_fallthru
        _
    $region6: #{neural_network_forward.1} parent=1 // loop_footer
      %s28 = sadd.s32 1, %s24
    $region7: #{neural_network_forward.1} parent=1 // loop_footer_branch
      %23 = sbr.rel target = $region3
    $region8: #{neural_network_forward.1} parent=1 // loop_exit
      _
    %2292 = vsyncpa [#allocation4], 1
    %s2293 = scalar_lea.sflag [#allocation4], 1
    %2294 = vsyncpa %s2293, 1

</llo_original>
